<compile_context>
chip_gen: v7x
topology: tpu7x:2x2x1
jax: 0.10.0
libtpu: 0.0.40
codegen_flags: <defaults>
</compile_context>

<pallas_src>
import jax
import jax.numpy as jnp
import numpy as np
from jax.experimental import pallas as pl
from jax.experimental.pallas import tpu as pltpu


def bilstm_parser_kernel(x_ref, wih_ref, whh_ref, b_ref,
                         wd_ref, bd_ref, wc_ref, bc_ref,
                         out_ref):
    """Fused BiLSTM + dense + classifier + log-softmax.

    Pre-packed weights (wrapper-side, PyTorch gate order i,f,g,o):
      x   : (S, 2I)  row s = [x_s | x_{S-1-s}]
      wih : (2I, 8H) rows 0:I -> fwd lanes, rows I:2I -> bwd lanes,
                     columns gate-type packed [i_f i_b | f_f f_b | g_f g_b | o_f o_b]
      whh : (2H, 8H) block-diagonal (rows 0:H -> fwd lanes, rows H:2H -> bwd lanes)
      b   : (1, 8H)  folded b_ih + b_hh, same packing
      i/f/o lanes of wih/whh/b are pre-scaled by 0.5 (sigmoid via tanh).
      wd  : (2H, 30), bd: (1, 30), wc: (30, C), bc: (1, C)
    """
    S = x_ref.shape[0]
    G = wih_ref.shape[1]             # 8*H
    H = G // 8
    H2 = 2 * H

    # Input projections for every timestep, both directions, all gates, with the
    # bwd half already time-reversed: ONE matmul, merged slab kept in vregs.
    gxm = (jnp.dot(x_ref[...], wih_ref[...],
                   preferred_element_type=jnp.float32)
           + b_ref[...])                                   # (S, 8H)

    whh = whh_ref[...]               # (2H, 8H) block-diagonal, pre-scaled

    # Hoisted per-lane affine turning the packed tanh into sigmoid on i/f/o
    # lanes: sigmoid(x) = 0.5*tanh(0.5*x) + 0.5 (0.5 folded into the weights).
    lane = jax.lax.broadcasted_iota(jnp.int32, (1, G), 1)
    is_g = (lane >= 4 * H) & (lane < 6 * H)
    a_mul = jnp.where(is_g, 1.0, 0.5).astype(jnp.float32)
    a_add = jnp.where(is_g, 0.0, 0.5).astype(jnp.float32)

    h_cat = jnp.zeros((1, H2), jnp.float32)   # [h_fwd | h_bwd]
    c_cat = jnp.zeros((1, H2), jnp.float32)
    h_f_rows = []                    # index s -> h_fwd at time s
    h_b_rows = []                    # index s -> h_bwd at time S-1-s

    # Static, fully unrolled recurrence (S is small and known at trace time);
    # every slice below is static -> zero runtime indexing cost.
    for s in range(S):
        # Single recurrent MXU push for both directions / all gates.
        rec = jnp.dot(h_cat, whh, preferred_element_type=jnp.float32)   # (1, 8H)
        gates = rec + gxm[s:s + 1, :]
        t_all = jnp.tanh(gates)                  # one EUP pass over all 8 gates
        act = t_all * a_mul + a_add              # sigmoid on i/f/o, tanh on g
        i_cat = act[:, 0 * H2:1 * H2]
        f_cat = act[:, 1 * H2:2 * H2]
        g_cat = act[:, 2 * H2:3 * H2]
        o_cat = act[:, 3 * H2:4 * H2]
        c_cat = f_cat * c_cat + i_cat * g_cat    # (1, 2H), both directions
        h_cat = o_cat * jnp.tanh(c_cat)          # (1, 2H), one tanh for both
        h_f_rows.append(h_cat[:, 0:H])
        h_b_rows.append(h_cat[:, H:H2])

    # Assemble (S, 2H) lstm_out in vregs (time order for both directions).
    lstm_out = jnp.concatenate(
        [jnp.concatenate(h_f_rows, axis=0),
         jnp.concatenate(h_b_rows[::-1], axis=0)], axis=1)

    # Head: dense(2H -> 30) + tanh, classifier(30 -> C), log_softmax over seq dim.
    dense_out = jnp.tanh(jnp.dot(lstm_out, wd_ref[...],
                                 preferred_element_type=jnp.float32)
                         + bd_ref[...])
    # TODO(synk): nn.Dropout has no inference-time effect; implemented as identity.
    logits = (jnp.dot(dense_out, wc_ref[...],
                      preferred_element_type=jnp.float32)
              + bc_ref[...])                     # (S, C)

    # Numerically stable LogSoftmax over dim=0 (sequence axis).
    m = jnp.max(logits, axis=0, keepdims=True)
    z = logits - m
    lse = jnp.log(jnp.sum(jnp.exp(z), axis=0, keepdims=True))
    out_ref[...] = z - lse


def _pack_params(params):
    """Pack per-gate LSTM weights into lane-dense, pre-scaled slabs."""
    H = params["whh_f"].shape[-1]
    I = params["wih_f"].shape[1]
    assert (8 * H) % 128 == 0, "8*hidden_size must be lane-aligned (multiple of 128)"
    zero_ih = jnp.zeros((I, H), jnp.float32)
    zero_hh = jnp.zeros((H, H), jnp.float32)
    wih_top, wih_bot, b_cols, whh_top, whh_bot = [], [], [], [], []
    for k in range(4):                       # gate order i, f, g, o
        wih_top += [params["wih_f"][k], zero_ih]   # x rows      -> fwd lanes
        wih_bot += [zero_ih, params["wih_b"][k]]   # x_rev rows  -> bwd lanes
        b_cols += [params["b_f"][k], params["b_b"][k]]
        whh_top += [params["whh_f"][k], zero_hh]   # h_fwd rows  -> fwd lanes
        whh_bot += [zero_hh, params["whh_b"][k]]   # h_bwd rows  -> bwd lanes
    wih_big = jnp.concatenate([jnp.concatenate(wih_top, axis=1),
                               jnp.concatenate(wih_bot, axis=1)], axis=0)  # (2I, 8H)
    whh_big = jnp.concatenate([jnp.concatenate(whh_top, axis=1),
                               jnp.concatenate(whh_bot, axis=1)], axis=0)  # (2H, 8H)
    b_big = jnp.concatenate(b_cols, axis=1)                                # (1, 8H)
    # Pre-scale i/f/o lanes by 0.5 so sigmoid(x) = 0.5*tanh(0.5*x)+0.5 needs
    # only the single packed tanh in-kernel; g lanes untouched.
    lane = np.arange(8 * H)
    scale = np.where((lane >= 4 * H) & (lane < 6 * H), 1.0, 0.5).astype(np.float32)
    scale = jnp.asarray(scale)[None, :]
    return wih_big * scale, whh_big * scale, b_big * scale


def bilstm_parser_forward(x, params):
    """x: (seq_len, 1, input_size) float32, returns (seq_len, output_size)."""
    S = x.shape[0]
    x2 = x.reshape(S, -1).astype(jnp.float32)
    xcat = jnp.concatenate([x2, x2[::-1]], axis=1)   # (S, 2I): [x_s | x_{S-1-s}]
    C = params["bc"].shape[1]
    wih_big, whh_big, b_big = _pack_params(params)

    vmem = pl.BlockSpec(memory_space=pltpu.MemorySpace.VMEM)
    out = pl.pallas_call(
        bilstm_parser_kernel,
        out_shape=jax.ShapeDtypeStruct((S, C), jnp.float32),
        in_specs=[vmem] * 8,
        out_specs=vmem,
    )(xcat, wih_big, whh_big, b_big,
      params["wd"], params["bd"], params["wc"], params["bc"])
    return out


def init_params(key, input_size, hidden_size, output_size, dense_size=30):
    """Deterministic synthetic parameters with PyTorch-like uniform init."""
    ks = jax.random.split(key, 10)
    b_lstm = 1.0 / np.sqrt(hidden_size)
    b_dense = 1.0 / np.sqrt(2 * hidden_size)
    b_cls = 1.0 / np.sqrt(dense_size)

    def u(k, shape, b):
        return jax.random.uniform(k, shape, jnp.float32, -b, b)

    return dict(
        wih_f=u(ks[0], (4, input_size, hidden_size), b_lstm),
        whh_f=u(ks[1], (4, hidden_size, hidden_size), b_lstm),
        b_f=u(ks[2], (4, 1, hidden_size), b_lstm),     # b_ih + b_hh folded
        wih_b=u(ks[3], (4, input_size, hidden_size), b_lstm),
        whh_b=u(ks[4], (4, hidden_size, hidden_size), b_lstm),
        b_b=u(ks[5], (4, 1, hidden_size), b_lstm),
        wd=u(ks[6], (2 * hidden_size, dense_size), b_dense),
        bd=u(ks[7], (1, dense_size), b_dense),
        wc=u(ks[8], (dense_size, output_size), b_cls),
        bc=u(ks[9], (1, output_size), b_cls),
    )


def reference_forward(x, params):
    """Plain-JAX reference with identical semantics (for verification)."""
    S = x.shape[0]
    x2 = x.reshape(S, -1).astype(jnp.float32)
    H = params["whh_f"].shape[-1]

    def run_dir(wih, whh, b, reverse):
        def step(carry, xt):
            h, c = carry
            gi = xt @ wih[0] + b[0, 0] + h @ whh[0]
            gf = xt @ wih[1] + b[1, 0] + h @ whh[1]
            gg = xt @ wih[2] + b[2, 0] + h @ whh[2]
            go = xt @ wih[3] + b[3, 0] + h @ whh[3]
            i = jax.nn.sigmoid(gi)
            f = jax.nn.sigmoid(gf)
            g = jnp.tanh(gg)
            o = jax.nn.sigmoid(go)
            c = f * c + i * g
            h = o * jnp.tanh(c)
            return (h, c), h
        init = (jnp.zeros((H,), jnp.float32), jnp.zeros((H,), jnp.float32))
        _, hs = jax.lax.scan(step, init, x2, reverse=reverse)
        return hs

    hf = run_dir(params["wih_f"], params["whh_f"], params["b_f"], False)
    hb = run_dir(params["wih_b"], params["whh_b"], params["b_b"], True)
    lstm_out = jnp.concatenate([hf, hb], axis=1)
    dense_out = jnp.tanh(lstm_out @ params["wd"] + params["bd"][0])
    logits = dense_out @ params["wc"] + params["bc"][0]
    return jax.nn.log_softmax(logits, axis=0)


if __name__ == "__main__":
    seq_len, input_size, hidden_size, output_size = 8, 16, 32, 8
    key = jax.random.PRNGKey(0)
    kx, kp = jax.random.split(key)

    x = jax.random.normal(kx, (seq_len, 1, input_size), jnp.float32)
    params = init_params(kp, input_size, hidden_size, output_size)

    out = jax.block_until_ready(bilstm_parser_forward(x, params))
    ref = jax.block_until_ready(reference_forward(x, params))
    np.testing.assert_allclose(np.asarray(out), np.asarray(ref),
                               atol=5e-3, rtol=5e-3)
    print("KERNEL_OK")
</pallas_src>

<mosaic_0001>
module attributes {stable_mosaic.version = 11 : i64} {
  func.func @bilstm_parser_kernel(%arg0: memref<8x32xf32, #tpu.memory_space<vmem>>, %arg1: memref<32x256xf32, #tpu.memory_space<vmem>>, %arg2: memref<64x256xf32, #tpu.memory_space<vmem>>, %arg3: memref<1x256xf32, #tpu.memory_space<vmem>>, %arg4: memref<64x30xf32, #tpu.memory_space<vmem>>, %arg5: memref<1x30xf32, #tpu.memory_space<vmem>>, %arg6: memref<30x8xf32, #tpu.memory_space<vmem>>, %arg7: memref<1x8xf32, #tpu.memory_space<vmem>>, %arg8: memref<8x8xf32, #tpu.memory_space<vmem>>) attributes {dimension_semantics = [], scalar_prefetch = 0 : i64, scratch_operands = 0 : i64, tpu.core_type = #tpu.core_type<tc>} {
    %c0 = arith.constant 0 : index
    %c0_0 = arith.constant 0 : index
    %0 = vector.load %arg0[%c0, %c0_0] : memref<8x32xf32, #tpu.memory_space<vmem>>, vector<8x32xf32>
    %c0_1 = arith.constant 0 : index
    %c0_2 = arith.constant 0 : index
    %1 = vector.load %arg1[%c0_1, %c0_2] : memref<32x256xf32, #tpu.memory_space<vmem>>, vector<32x256xf32>
    %cst = arith.constant dense<0.000000e+00> : vector<8x256xf32>
    %2 = tpu.matmul %0, %1, %cst {dimension_numbers = #tpu.dot_dimension_numbers<[1], [0], [0], [1], [0, 0, 1, 1], [], []>} : vector<8x32xf32>, vector<32x256xf32>, vector<8x256xf32> -> vector<8x256xf32>
    %c0_3 = arith.constant 0 : index
    %c0_4 = arith.constant 0 : index
    %3 = vector.load %arg3[%c0_3, %c0_4] : memref<1x256xf32, #tpu.memory_space<vmem>>, vector<1x256xf32>
    %4 = vector.broadcast %3 : vector<1x256xf32> to vector<8x256xf32>
    %5 = arith.addf %2, %4 : vector<8x256xf32>
    %c0_5 = arith.constant 0 : index
    %c0_6 = arith.constant 0 : index
    %6 = vector.load %arg2[%c0_5, %c0_6] : memref<64x256xf32, #tpu.memory_space<vmem>>, vector<64x256xf32>
    %7 = tpu.iota {dimensions = array<i32: 1>} : vector<1x256xi32>
    %c128_i32 = arith.constant 128 : i32
    %8 = vector.broadcast %c128_i32 : i32 to vector<1x256xi32>
    %9 = arith.cmpi sge, %7, %8 : vector<1x256xi32>
    %c192_i32 = arith.constant 192 : i32
    %10 = vector.broadcast %c192_i32 : i32 to vector<1x256xi32>
    %11 = arith.cmpi slt, %7, %10 : vector<1x256xi32>
    %12 = arith.andi %9, %11 : vector<1x256xi1>
    %cst_7 = arith.constant 1.000000e+00 : f32
    %cst_8 = arith.constant 5.000000e-01 : f32
    %13 = vector.broadcast %cst_7 : f32 to vector<1x256xf32>
    %14 = vector.broadcast %cst_8 : f32 to vector<1x256xf32>
    %15 = arith.select %12, %13, %14 : vector<1x256xi1>, vector<1x256xf32>
    %cst_9 = arith.constant 0.000000e+00 : f32
    %cst_10 = arith.constant 5.000000e-01 : f32
    %16 = vector.broadcast %cst_9 : f32 to vector<1x256xf32>
    %17 = vector.broadcast %cst_10 : f32 to vector<1x256xf32>
    %18 = arith.select %12, %16, %17 : vector<1x256xi1>, vector<1x256xf32>
    %cst_11 = arith.constant 0.000000e+00 : f32
    %19 = vector.broadcast %cst_11 : f32 to vector<1x64xf32>
    %cst_12 = arith.constant 0.000000e+00 : f32
    %20 = vector.broadcast %cst_12 : f32 to vector<1x64xf32>
    %cst_13 = arith.constant dense<0.000000e+00> : vector<1x256xf32>
    %21 = tpu.matmul %19, %6, %cst_13 {dimension_numbers = #tpu.dot_dimension_numbers<[1], [0], [0], [1], [0, 0, 1, 1], [], []>} : vector<1x64xf32>, vector<64x256xf32>, vector<1x256xf32> -> vector<1x256xf32>
    %22 = vector.extract_strided_slice %5 {offsets = [0, 0], sizes = [1, 256], strides = [1, 1]} : vector<8x256xf32> to vector<1x256xf32>
    %23 = arith.addf %21, %22 : vector<1x256xf32>
    %24 = math.tanh %23 : vector<1x256xf32>
    %25 = arith.mulf %24, %15 : vector<1x256xf32>
    %26 = arith.addf %25, %18 : vector<1x256xf32>
    %27 = vector.extract_strided_slice %26 {offsets = [0, 0], sizes = [1, 64], strides = [1, 1]} : vector<1x256xf32> to vector<1x64xf32>
    %28 = vector.extract_strided_slice %26 {offsets = [0, 64], sizes = [1, 64], strides = [1, 1]} : vector<1x256xf32> to vector<1x64xf32>
    %29 = vector.extract_strided_slice %26 {offsets = [0, 128], sizes = [1, 64], strides = [1, 1]} : vector<1x256xf32> to vector<1x64xf32>
    %30 = vector.extract_strided_slice %26 {offsets = [0, 192], sizes = [1, 64], strides = [1, 1]} : vector<1x256xf32> to vector<1x64xf32>
    %31 = arith.mulf %28, %20 : vector<1x64xf32>
    %32 = arith.mulf %27, %29 : vector<1x64xf32>
    %33 = arith.addf %31, %32 : vector<1x64xf32>
    %34 = math.tanh %33 : vector<1x64xf32>
    %35 = arith.mulf %30, %34 : vector<1x64xf32>
    %36 = vector.extract_strided_slice %35 {offsets = [0, 0], sizes = [1, 32], strides = [1, 1]} : vector<1x64xf32> to vector<1x32xf32>
    %37 = vector.extract_strided_slice %35 {offsets = [0, 32], sizes = [1, 32], strides = [1, 1]} : vector<1x64xf32> to vector<1x32xf32>
    %cst_14 = arith.constant dense<0.000000e+00> : vector<1x256xf32>
    %38 = tpu.matmul %35, %6, %cst_14 {dimension_numbers = #tpu.dot_dimension_numbers<[1], [0], [0], [1], [0, 0, 1, 1], [], []>} : vector<1x64xf32>, vector<64x256xf32>, vector<1x256xf32> -> vector<1x256xf32>
    %39 = vector.extract_strided_slice %5 {offsets = [1, 0], sizes = [1, 256], strides = [1, 1]} : vector<8x256xf32> to vector<1x256xf32>
    %40 = arith.addf %38, %39 : vector<1x256xf32>
    %41 = math.tanh %40 : vector<1x256xf32>
    %42 = arith.mulf %41, %15 : vector<1x256xf32>
    %43 = arith.addf %42, %18 : vector<1x256xf32>
    %44 = vector.extract_strided_slice %43 {offsets = [0, 0], sizes = [1, 64], strides = [1, 1]} : vector<1x256xf32> to vector<1x64xf32>
    %45 = vector.extract_strided_slice %43 {offsets = [0, 64], sizes = [1, 64], strides = [1, 1]} : vector<1x256xf32> to vector<1x64xf32>
    %46 = vector.extract_strided_slice %43 {offsets = [0, 128], sizes = [1, 64], strides = [1, 1]} : vector<1x256xf32> to vector<1x64xf32>
    %47 = vector.extract_strided_slice %43 {offsets = [0, 192], sizes = [1, 64], strides = [1, 1]} : vector<1x256xf32> to vector<1x64xf32>
    %48 = arith.mulf %45, %33 : vector<1x64xf32>
    %49 = arith.mulf %44, %46 : vector<1x64xf32>
    %50 = arith.addf %48, %49 : vector<1x64xf32>
    %51 = math.tanh %50 : vector<1x64xf32>
    %52 = arith.mulf %47, %51 : vector<1x64xf32>
    %53 = vector.extract_strided_slice %52 {offsets = [0, 0], sizes = [1, 32], strides = [1, 1]} : vector<1x64xf32> to vector<1x32xf32>
    %54 = vector.extract_strided_slice %52 {offsets = [0, 32], sizes = [1, 32], strides = [1, 1]} : vector<1x64xf32> to vector<1x32xf32>
    %cst_15 = arith.constant dense<0.000000e+00> : vector<1x256xf32>
    %55 = tpu.matmul %52, %6, %cst_15 {dimension_numbers = #tpu.dot_dimension_numbers<[1], [0], [0], [1], [0, 0, 1, 1], [], []>} : vector<1x64xf32>, vector<64x256xf32>, vector<1x256xf32> -> vector<1x256xf32>
    %56 = vector.extract_strided_slice %5 {offsets = [2, 0], sizes = [1, 256], strides = [1, 1]} : vector<8x256xf32> to vector<1x256xf32>
    %57 = arith.addf %55, %56 : vector<1x256xf32>
    %58 = math.tanh %57 : vector<1x256xf32>
    %59 = arith.mulf %58, %15 : vector<1x256xf32>
    %60 = arith.addf %59, %18 : vector<1x256xf32>
    %61 = vector.extract_strided_slice %60 {offsets = [0, 0], sizes = [1, 64], strides = [1, 1]} : vector<1x256xf32> to vector<1x64xf32>
    %62 = vector.extract_strided_slice %60 {offsets = [0, 64], sizes = [1, 64], strides = [1, 1]} : vector<1x256xf32> to vector<1x64xf32>
    %63 = vector.extract_strided_slice %60 {offsets = [0, 128], sizes = [1, 64], strides = [1, 1]} : vector<1x256xf32> to vector<1x64xf32>
    %64 = vector.extract_strided_slice %60 {offsets = [0, 192], sizes = [1, 64], strides = [1, 1]} : vector<1x256xf32> to vector<1x64xf32>
    %65 = arith.mulf %62, %50 : vector<1x64xf32>
    %66 = arith.mulf %61, %63 : vector<1x64xf32>
    %67 = arith.addf %65, %66 : vector<1x64xf32>
    %68 = math.tanh %67 : vector<1x64xf32>
    %69 = arith.mulf %64, %68 : vector<1x64xf32>
    %70 = vector.extract_strided_slice %69 {offsets = [0, 0], sizes = [1, 32], strides = [1, 1]} : vector<1x64xf32> to vector<1x32xf32>
    %71 = vector.extract_strided_slice %69 {offsets = [0, 32], sizes = [1, 32], strides = [1, 1]} : vector<1x64xf32> to vector<1x32xf32>
    %cst_16 = arith.constant dense<0.000000e+00> : vector<1x256xf32>
    %72 = tpu.matmul %69, %6, %cst_16 {dimension_numbers = #tpu.dot_dimension_numbers<[1], [0], [0], [1], [0, 0, 1, 1], [], []>} : vector<1x64xf32>, vector<64x256xf32>, vector<1x256xf32> -> vector<1x256xf32>
    %73 = vector.extract_strided_slice %5 {offsets = [3, 0], sizes = [1, 256], strides = [1, 1]} : vector<8x256xf32> to vector<1x256xf32>
    %74 = arith.addf %72, %73 : vector<1x256xf32>
    %75 = math.tanh %74 : vector<1x256xf32>
    %76 = arith.mulf %75, %15 : vector<1x256xf32>
    %77 = arith.addf %76, %18 : vector<1x256xf32>
    %78 = vector.extract_strided_slice %77 {offsets = [0, 0], sizes = [1, 64], strides = [1, 1]} : vector<1x256xf32> to vector<1x64xf32>
    %79 = vector.extract_strided_slice %77 {offsets = [0, 64], sizes = [1, 64], strides = [1, 1]} : vector<1x256xf32> to vector<1x64xf32>
    %80 = vector.extract_strided_slice %77 {offsets = [0, 128], sizes = [1, 64], strides = [1, 1]} : vector<1x256xf32> to vector<1x64xf32>
    %81 = vector.extract_strided_slice %77 {offsets = [0, 192], sizes = [1, 64], strides = [1, 1]} : vector<1x256xf32> to vector<1x64xf32>
    %82 = arith.mulf %79, %67 : vector<1x64xf32>
    %83 = arith.mulf %78, %80 : vector<1x64xf32>
    %84 = arith.addf %82, %83 : vector<1x64xf32>
    %85 = math.tanh %84 : vector<1x64xf32>
    %86 = arith.mulf %81, %85 : vector<1x64xf32>
    %87 = vector.extract_strided_slice %86 {offsets = [0, 0], sizes = [1, 32], strides = [1, 1]} : vector<1x64xf32> to vector<1x32xf32>
    %88 = vector.extract_strided_slice %86 {offsets = [0, 32], sizes = [1, 32], strides = [1, 1]} : vector<1x64xf32> to vector<1x32xf32>
    %cst_17 = arith.constant dense<0.000000e+00> : vector<1x256xf32>
    %89 = tpu.matmul %86, %6, %cst_17 {dimension_numbers = #tpu.dot_dimension_numbers<[1], [0], [0], [1], [0, 0, 1, 1], [], []>} : vector<1x64xf32>, vector<64x256xf32>, vector<1x256xf32> -> vector<1x256xf32>
    %90 = vector.extract_strided_slice %5 {offsets = [4, 0], sizes = [1, 256], strides = [1, 1]} : vector<8x256xf32> to vector<1x256xf32>
    %91 = arith.addf %89, %90 : vector<1x256xf32>
    %92 = math.tanh %91 : vector<1x256xf32>
    %93 = arith.mulf %92, %15 : vector<1x256xf32>
    %94 = arith.addf %93, %18 : vector<1x256xf32>
    %95 = vector.extract_strided_slice %94 {offsets = [0, 0], sizes = [1, 64], strides = [1, 1]} : vector<1x256xf32> to vector<1x64xf32>
    %96 = vector.extract_strided_slice %94 {offsets = [0, 64], sizes = [1, 64], strides = [1, 1]} : vector<1x256xf32> to vector<1x64xf32>
    %97 = vector.extract_strided_slice %94 {offsets = [0, 128], sizes = [1, 64], strides = [1, 1]} : vector<1x256xf32> to vector<1x64xf32>
    %98 = vector.extract_strided_slice %94 {offsets = [0, 192], sizes = [1, 64], strides = [1, 1]} : vector<1x256xf32> to vector<1x64xf32>
    %99 = arith.mulf %96, %84 : vector<1x64xf32>
    %100 = arith.mulf %95, %97 : vector<1x64xf32>
    %101 = arith.addf %99, %100 : vector<1x64xf32>
    %102 = math.tanh %101 : vector<1x64xf32>
    %103 = arith.mulf %98, %102 : vector<1x64xf32>
    %104 = vector.extract_strided_slice %103 {offsets = [0, 0], sizes = [1, 32], strides = [1, 1]} : vector<1x64xf32> to vector<1x32xf32>
    %105 = vector.extract_strided_slice %103 {offsets = [0, 32], sizes = [1, 32], strides = [1, 1]} : vector<1x64xf32> to vector<1x32xf32>
    %cst_18 = arith.constant dense<0.000000e+00> : vector<1x256xf32>
    %106 = tpu.matmul %103, %6, %cst_18 {dimension_numbers = #tpu.dot_dimension_numbers<[1], [0], [0], [1], [0, 0, 1, 1], [], []>} : vector<1x64xf32>, vector<64x256xf32>, vector<1x256xf32> -> vector<1x256xf32>
    %107 = vector.extract_strided_slice %5 {offsets = [5, 0], sizes = [1, 256], strides = [1, 1]} : vector<8x256xf32> to vector<1x256xf32>
    %108 = arith.addf %106, %107 : vector<1x256xf32>
    %109 = math.tanh %108 : vector<1x256xf32>
    %110 = arith.mulf %109, %15 : vector<1x256xf32>
    %111 = arith.addf %110, %18 : vector<1x256xf32>
    %112 = vector.extract_strided_slice %111 {offsets = [0, 0], sizes = [1, 64], strides = [1, 1]} : vector<1x256xf32> to vector<1x64xf32>
    %113 = vector.extract_strided_slice %111 {offsets = [0, 64], sizes = [1, 64], strides = [1, 1]} : vector<1x256xf32> to vector<1x64xf32>
    %114 = vector.extract_strided_slice %111 {offsets = [0, 128], sizes = [1, 64], strides = [1, 1]} : vector<1x256xf32> to vector<1x64xf32>
    %115 = vector.extract_strided_slice %111 {offsets = [0, 192], sizes = [1, 64], strides = [1, 1]} : vector<1x256xf32> to vector<1x64xf32>
    %116 = arith.mulf %113, %101 : vector<1x64xf32>
    %117 = arith.mulf %112, %114 : vector<1x64xf32>
    %118 = arith.addf %116, %117 : vector<1x64xf32>
    %119 = math.tanh %118 : vector<1x64xf32>
    %120 = arith.mulf %115, %119 : vector<1x64xf32>
    %121 = vector.extract_strided_slice %120 {offsets = [0, 0], sizes = [1, 32], strides = [1, 1]} : vector<1x64xf32> to vector<1x32xf32>
    %122 = vector.extract_strided_slice %120 {offsets = [0, 32], sizes = [1, 32], strides = [1, 1]} : vector<1x64xf32> to vector<1x32xf32>
    %cst_19 = arith.constant dense<0.000000e+00> : vector<1x256xf32>
    %123 = tpu.matmul %120, %6, %cst_19 {dimension_numbers = #tpu.dot_dimension_numbers<[1], [0], [0], [1], [0, 0, 1, 1], [], []>} : vector<1x64xf32>, vector<64x256xf32>, vector<1x256xf32> -> vector<1x256xf32>
    %124 = vector.extract_strided_slice %5 {offsets = [6, 0], sizes = [1, 256], strides = [1, 1]} : vector<8x256xf32> to vector<1x256xf32>
    %125 = arith.addf %123, %124 : vector<1x256xf32>
    %126 = math.tanh %125 : vector<1x256xf32>
    %127 = arith.mulf %126, %15 : vector<1x256xf32>
    %128 = arith.addf %127, %18 : vector<1x256xf32>
    %129 = vector.extract_strided_slice %128 {offsets = [0, 0], sizes = [1, 64], strides = [1, 1]} : vector<1x256xf32> to vector<1x64xf32>
    %130 = vector.extract_strided_slice %128 {offsets = [0, 64], sizes = [1, 64], strides = [1, 1]} : vector<1x256xf32> to vector<1x64xf32>
    %131 = vector.extract_strided_slice %128 {offsets = [0, 128], sizes = [1, 64], strides = [1, 1]} : vector<1x256xf32> to vector<1x64xf32>
    %132 = vector.extract_strided_slice %128 {offsets = [0, 192], sizes = [1, 64], strides = [1, 1]} : vector<1x256xf32> to vector<1x64xf32>
    %133 = arith.mulf %130, %118 : vector<1x64xf32>
    %134 = arith.mulf %129, %131 : vector<1x64xf32>
    %135 = arith.addf %133, %134 : vector<1x64xf32>
    %136 = math.tanh %135 : vector<1x64xf32>
    %137 = arith.mulf %132, %136 : vector<1x64xf32>
    %138 = vector.extract_strided_slice %137 {offsets = [0, 0], sizes = [1, 32], strides = [1, 1]} : vector<1x64xf32> to vector<1x32xf32>
    %139 = vector.extract_strided_slice %137 {offsets = [0, 32], sizes = [1, 32], strides = [1, 1]} : vector<1x64xf32> to vector<1x32xf32>
    %cst_20 = arith.constant dense<0.000000e+00> : vector<1x256xf32>
    %140 = tpu.matmul %137, %6, %cst_20 {dimension_numbers = #tpu.dot_dimension_numbers<[1], [0], [0], [1], [0, 0, 1, 1], [], []>} : vector<1x64xf32>, vector<64x256xf32>, vector<1x256xf32> -> vector<1x256xf32>
    %141 = vector.extract_strided_slice %5 {offsets = [7, 0], sizes = [1, 256], strides = [1, 1]} : vector<8x256xf32> to vector<1x256xf32>
    %142 = arith.addf %140, %141 : vector<1x256xf32>
    %143 = math.tanh %142 : vector<1x256xf32>
    %144 = arith.mulf %143, %15 : vector<1x256xf32>
    %145 = arith.addf %144, %18 : vector<1x256xf32>
    %146 = vector.extract_strided_slice %145 {offsets = [0, 0], sizes = [1, 64], strides = [1, 1]} : vector<1x256xf32> to vector<1x64xf32>
    %147 = vector.extract_strided_slice %145 {offsets = [0, 64], sizes = [1, 64], strides = [1, 1]} : vector<1x256xf32> to vector<1x64xf32>
    %148 = vector.extract_strided_slice %145 {offsets = [0, 128], sizes = [1, 64], strides = [1, 1]} : vector<1x256xf32> to vector<1x64xf32>
    %149 = vector.extract_strided_slice %145 {offsets = [0, 192], sizes = [1, 64], strides = [1, 1]} : vector<1x256xf32> to vector<1x64xf32>
    %150 = arith.mulf %147, %135 : vector<1x64xf32>
    %151 = arith.mulf %146, %148 : vector<1x64xf32>
    %152 = arith.addf %150, %151 : vector<1x64xf32>
    %153 = math.tanh %152 : vector<1x64xf32>
    %154 = arith.mulf %149, %153 : vector<1x64xf32>
    %155 = vector.extract_strided_slice %154 {offsets = [0, 0], sizes = [1, 32], strides = [1, 1]} : vector<1x64xf32> to vector<1x32xf32>
    %156 = vector.extract_strided_slice %154 {offsets = [0, 32], sizes = [1, 32], strides = [1, 1]} : vector<1x64xf32> to vector<1x32xf32>
    %157 = tpu.concatenate %36, %53, %70, %87, %104, %121, %138, %155 in 0 : vector<1x32xf32>, vector<1x32xf32>, vector<1x32xf32>, vector<1x32xf32>, vector<1x32xf32>, vector<1x32xf32>, vector<1x32xf32>, vector<1x32xf32> -> vector<8x32xf32>
    %158 = tpu.concatenate %156, %139, %122, %105, %88, %71, %54, %37 in 0 : vector<1x32xf32>, vector<1x32xf32>, vector<1x32xf32>, vector<1x32xf32>, vector<1x32xf32>, vector<1x32xf32>, vector<1x32xf32>, vector<1x32xf32> -> vector<8x32xf32>
    %159 = tpu.concatenate %157, %158 in 1 : vector<8x32xf32>, vector<8x32xf32> -> vector<8x64xf32>
    %c0_21 = arith.constant 0 : index
    %c0_22 = arith.constant 0 : index
    %160 = vector.load %arg4[%c0_21, %c0_22] : memref<64x30xf32, #tpu.memory_space<vmem>>, vector<64x30xf32>
    %cst_23 = arith.constant dense<0.000000e+00> : vector<8x30xf32>
    %161 = tpu.matmul %159, %160, %cst_23 {dimension_numbers = #tpu.dot_dimension_numbers<[1], [0], [0], [1], [0, 0, 1, 1], [], []>} : vector<8x64xf32>, vector<64x30xf32>, vector<8x30xf32> -> vector<8x30xf32>
    %c0_24 = arith.constant 0 : index
    %c0_25 = arith.constant 0 : index
    %162 = vector.load %arg5[%c0_24, %c0_25] : memref<1x30xf32, #tpu.memory_space<vmem>>, vector<1x30xf32>
    %163 = vector.broadcast %162 : vector<1x30xf32> to vector<8x30xf32>
    %164 = arith.addf %161, %163 : vector<8x30xf32>
    %165 = math.tanh %164 : vector<8x30xf32>
    %c0_26 = arith.constant 0 : index
    %c0_27 = arith.constant 0 : index
    %166 = vector.load %arg6[%c0_26, %c0_27] : memref<30x8xf32, #tpu.memory_space<vmem>>, vector<30x8xf32>
    %cst_28 = arith.constant dense<0.000000e+00> : vector<8x8xf32>
    %167 = tpu.matmul %165, %166, %cst_28 {dimension_numbers = #tpu.dot_dimension_numbers<[1], [0], [0], [1], [0, 0, 1, 1], [], []>} : vector<8x30xf32>, vector<30x8xf32>, vector<8x8xf32> -> vector<8x8xf32>
    %c0_29 = arith.constant 0 : index
    %c0_30 = arith.constant 0 : index
    %168 = vector.load %arg7[%c0_29, %c0_30] : memref<1x8xf32, #tpu.memory_space<vmem>>, vector<1x8xf32>
    %169 = vector.broadcast %168 : vector<1x8xf32> to vector<8x8xf32>
    %170 = arith.addf %167, %169 : vector<8x8xf32>
    %cst_31 = arith.constant dense<0xFF800000> : vector<8xf32>
    %171 = vector.multi_reduction <maximumf>, %170, %cst_31 [0] : vector<8x8xf32> to vector<8xf32>
    %172 = vector.shape_cast %171 : vector<8xf32> to vector<1x8xf32>
    %173 = vector.broadcast %172 : vector<1x8xf32> to vector<8x8xf32>
    %174 = arith.subf %170, %173 : vector<8x8xf32>
    %175 = math.exp %174 : vector<8x8xf32>
    %cst_32 = arith.constant dense<0.000000e+00> : vector<8xf32>
    %176 = vector.multi_reduction <add>, %175, %cst_32 [0] : vector<8x8xf32> to vector<8xf32>
    %177 = vector.shape_cast %176 : vector<8xf32> to vector<1x8xf32>
    %178 = math.log %177 : vector<1x8xf32>
    %179 = vector.broadcast %178 : vector<1x8xf32> to vector<8x8xf32>
    %180 = arith.subf %174, %179 : vector<8x8xf32>
    %c0_33 = arith.constant 0 : index
    %c0_34 = arith.constant 0 : index
    %181 = vector.load %arg8[%c0_33, %c0_34] : memref<8x8xf32, #tpu.memory_space<vmem>>, vector<8x8xf32>
    tpu.vector_store %arg8[%c0_33, %c0_34], %180 {strides = array<i32>} : memref<8x8xf32, #tpu.memory_space<vmem>>, vector<8x8xf32>,
    return
  }
}

</mosaic_0001>

<llo_original>
// kernel: tpu_custom_call.1
$region0: #{tpu_custom_call.1}
  #allocation0 [shape = 'u32[]', space=smem, size = 0x4, offset = 0x4, fixed_abs, tag = 'smem constant byte address 0x4 - core index']
  #allocation1 [shape = 'u32[144,128]{1,0:T(1,128)}', space=vmem, size = 0x12000, scoped, tag = 'internal scratch']
  %s0 = inlined_call_operand.vmem [shape: f32[8,32], index: 0, kind: input, shape index: {}]
  %s1 = inlined_call_operand.hbm [shape: f32[32,256], index: 1, kind: input, shape index: {}]
  %s2 = inlined_call_operand.vmem [shape: f32[64,256], index: 2, kind: input, shape index: {}]
  %s3 = inlined_call_operand.vmem [shape: f32[1,256], index: 3, kind: input, shape index: {}]
  %s4 = inlined_call_operand.vmem [shape: f32[64,30], index: 4, kind: input, shape index: {}]
  %s5 = inlined_call_operand.vmem [shape: f32[1,30], index: 5, kind: input, shape index: {}]
  %s6 = inlined_call_operand.vmem [shape: f32[30,8], index: 6, kind: input, shape index: {}]
  %s7 = inlined_call_operand.vmem [shape: f32[1,8], index: 7, kind: input, shape index: {}]
  %s8 = inlined_call_operand.hbm [shape: f32[8,8], index: 8, kind: output, shape index: {}]
  %s9 = sld [smem:[#allocation0]]
  $region46: #{tpu_custom_call.1} parent=0
    _
  %s11 = ssub.s32 1, %s9
  %s12 = scalar_select 0, %s11, %s9
  $region1: #{tpu_custom_call.1} parent=0
    #allocation2 [shape = 'u8[32768]{0}', space=vmem, size = 0x8000, scoped, tag = 'input window, operand 1, single buffered']
    #allocation3 [shape = 's32[1]{0}', space=sflag, size = 0x4, scoped, tag = 'scoped memory for tpu_custom_call.1']
    #allocation4 [shape = 's32[1]{0}', space=sflag, size = 0x4, scoped, tag = 'scoped memory for tpu_custom_call.1']
    #allocation5 [shape = 'u8[4096]{0}', space=vmem, size = 0x1000, scoped, tag = 'output window, operand 0, single buffered']
    %13 = vsyncpa [#allocation3], 0
    %14 = vsyncpa [#allocation4], 0
    // Predicated region
    $region2: #{tpu_custom_call.1} parent=1 // pred_check
      _
    $region3: #{tpu_custom_call.1} parent=1 // pred_check_branch
      %16 = sbr.rel (0) target = $region5
    $region4: #{tpu_custom_call.1} parent=1 // pred_region
      _
    $region5: #{tpu_custom_call.1} parent=1 // pred_fallthru
      _
    // Predicated region
    $region6: #{tpu_custom_call.1} parent=1 // pred_check
      _
    $region7: #{tpu_custom_call.1} parent=1 // pred_check_branch
      %18 = sbr.rel (0) target = $region9
    $region8: #{tpu_custom_call.1} parent=1 // pred_region
      %s20 = ssub.s32 1024, 1024
      %21 = vsyncadd [#allocation3], %s20
      %s22 = sshll.u32 [#allocation2], 4
      %s23 = int_to_ptr.vmem [resolvable:$true] %s22
      %28 = dma.hbm_to_vmem [thread:$0]  %s1, 1024, %s23, [#allocation3], 256, 256, 16
    $region9: #{tpu_custom_call.1} parent=1 // pred_fallthru
      _
    // Predicated region
    $region10: #{tpu_custom_call.1} parent=1 // pred_check
      _
    $region11: #{tpu_custom_call.1} parent=1 // pred_check_branch
      %30 = sbr.rel (0) target = $region13
    $region12: #{tpu_custom_call.1} parent=1 // pred_region
      _
    $region13: #{tpu_custom_call.1} parent=1 // pred_fallthru
      _
    // Predicated region
    $region14: #{tpu_custom_call.1} parent=1 // pred_check
      _
    $region15: #{tpu_custom_call.1} parent=1 // pred_check_branch
      %32 = sbr.rel (0) target = $region17
    $region16: #{tpu_custom_call.1} parent=1 // pred_region
      _
    $region17: #{tpu_custom_call.1} parent=1 // pred_fallthru
      _
    // Predicated region
    $region18: #{tpu_custom_call.1} parent=1 // pred_check
      _
    $region19: #{tpu_custom_call.1} parent=1 // pred_check_branch
      %34 = sbr.rel (0) target = $region21
    $region20: #{tpu_custom_call.1} parent=1 // pred_region
      _
    $region21: #{tpu_custom_call.1} parent=1 // pred_fallthru
      _
    // Predicated region
    $region22: #{tpu_custom_call.1} parent=1 // pred_check
      _
    $region23: #{tpu_custom_call.1} parent=1 // pred_check_branch
      %36 = sbr.rel (0) target = $region25
    $region24: #{tpu_custom_call.1} parent=1 // pred_region
      _
    $region25: #{tpu_custom_call.1} parent=1 // pred_fallthru
      _
    // Predicated region
    $region26: #{tpu_custom_call.1} parent=1 // pred_check
      _
    $region27: #{tpu_custom_call.1} parent=1 // pred_check_branch
      %38 = sbr.rel (0) target = $region29
    $region28: #{tpu_custom_call.1} parent=1 // pred_region
      _
    $region29: #{tpu_custom_call.1} parent=1 // pred_fallthru
      _
    // Predicated region
    $region30: #{tpu_custom_call.1} parent=1 // pred_check
      _
    $region31: #{tpu_custom_call.1} parent=1 // pred_check_branch
      %40 = sbr.rel (0) target = $region33
    $region32: #{tpu_custom_call.1} parent=1 // pred_region
      _
    $region33: #{tpu_custom_call.1} parent=1 // pred_fallthru
      _
    // Predicated region
    $region34: #{tpu_custom_call.1} parent=1 // pred_check
      _
    $region35: #{tpu_custom_call.1} parent=1 // pred_check_branch
      %42 = sbr.rel (0) target = $region37
    $region36: #{tpu_custom_call.1} parent=1 // pred_region
      %43 = dma.done [#allocation3], 1024
    $region37: #{tpu_custom_call.1} parent=1 // pred_fallthru
      _
    %v44 = vld [vmem:[%s0] sm:$0xff]
    %v45 = vld [vmem:[#allocation2] sm:$0xff]
    %v46 = vld [vmem:[#allocation2 + $0x8] sm:$0xff]
    %v47 = vld [vmem:[#allocation2 + $0x10] sm:$0xff]
    %v48 = vld [vmem:[#allocation2 + $0x18] sm:$0xff]
    %v49 = vld [vmem:[#allocation2 + $0x20] sm:$0xff]
    %v50 = vld [vmem:[#allocation2 + $0x28] sm:$0xff]
    %v51 = vld [vmem:[#allocation2 + $0x30] sm:$0xff]
    %v52 = vld [vmem:[#allocation2 + $0x38] sm:$0xff]
    %v53 = vld [vmem:[%s3] sm:$0x3]
    %v55 = vlaneseq
    %v56 = vshrl.u32 %v55, 7
    %v57 = vsub.s32 0, %v56
    %v58 = vrot.slane %v53, %v57
    %v59 = vlaneseq
    %v60 = vshrl.u32 %v59, 7
    %v61 = vsub.s32 1, %v60
    %v62 = vrot.slane %v53, %v61
    %vm65 = vcmask 261120
    %v67 = vsel %vm65, %v44, 0
    %69 = vmatprep.subr.mxu0 %v46
    %70 = vmatpush1.msra.mxu0 %v45
    %71 = vmatprep.subr.mxu0 %v48
    %72 = vmatpush1.msra.mxu0 %v47
    %73 = vmatprep.subr.mxu0 %v50
    %74 = vmatpush1.msra.mxu0 %v49
    %75 = vmatprep.subr.mxu0 %v52
    %76 = vmatpush1.msra.mxu0 %v51
    %77 = vmatprep.subr.mxu0 0.0
    %78 = vmatpush1.msra.mxu0 0.0
    %79 = vmatprep.subr.mxu0 0.0
    %80 = vmatpush1.msra.mxu0 0.0
    %81 = vmatprep.subr.mxu0 0.0
    %82 = vmatpush1.msra.mxu0 0.0
    %83 = vmatprep.subr.mxu0 0.0
    %84 = vmatpush1.msra.mxu0 0.0
    %85 = vmatprep.subr.mxu0 0.0
    %86 = vmatpush1.msra.mxu0 0.0
    %87 = vmatprep.subr.mxu0 0.0
    %88 = vmatpush1.msra.mxu0 0.0
    %89 = vmatprep.subr.mxu0 0.0
    %90 = vmatpush1.msra.mxu0 0.0
    %91 = vmatprep.subr.mxu0 0.0
    %92 = vmatpush1.msra.mxu0 0.0
    %93 = vmatprep.subr.mxu0 0.0
    %94 = vmatpush1.msra.mxu0 0.0
    %95 = vmatprep.subr.mxu0 0.0
    %96 = vmatpush1.msra.mxu0 0.0
    %97 = vmatprep.subr.mxu0 0.0
    %98 = vmatpush1.msra.mxu0 0.0
    %99 = vmatprep.subr.mxu0 0.0
    %100 = vmatpush1.msra.mxu0 0.0
    %101 = vmatprep.subr.mxu0 0.0
    %102 = vmatpush1.msra.mxu0 0.0
    %103 = vmatprep.subr.mxu0 0.0
    %104 = vmatpush1.msra.mxu0 0.0
    %105 = vmatprep.subr.mxu0 0.0
    %106 = vmatpush1.msra.mxu0 0.0
    %107 = vmatprep.subr.mxu0 0.0
    %108 = vmatpush1.msra.mxu0 0.0
    %109 = vmatprep.subr.mxu0 0.0
    %110 = vmatpush1.msra.mxu0 0.0
    %111 = vmatprep.subr.mxu0 0.0
    %112 = vmatpush1.msra.mxu0 0.0
    %113 = vmatprep.subr.mxu0 0.0
    %114 = vmatpush1.msra.mxu0 0.0
    %115 = vmatprep.subr.mxu0 0.0
    %116 = vmatpush1.msra.mxu0 0.0
    %117 = vmatprep.subr.mxu0 0.0
    %118 = vmatpush1.msra.mxu0 0.0
    %119 = vmatprep.subr.mxu0 0.0
    %120 = vmatpush1.msra.mxu0 0.0
    %121 = vmatprep.subr.mxu0 0.0
    %122 = vmatpush1.msra.mxu0 0.0
    %123 = vmatprep.subr.mxu0 0.0
    %124 = vmatpush1.msra.mxu0 0.0
    %125 = vmatprep.subr.mxu0 0.0
    %126 = vmatpush1.msra.mxu0 0.0
    %127 = vmatprep.subr.mxu0 0.0
    %128 = vmatpush1.msra.mxu0 0.0
    %129 = vmatprep.subr.mxu0 0.0
    %130 = vmatpush1.msra.mxu0 0.0
    %131 = vmatprep.subr.mxu0 0.0
    %132 = vmatpush1.msra.mxu0 0.0
    %133 = vmatprep.mubr.f32.mxu0 0.0
    %134 = vmatmul.mubr.f32.gmra.mrb[0].mxu0 %v67
    %v135 = vpop.f32.mrb[0].mxu0
    %v136 = vadd.f32 %v58, %v135
    %v137 = vpop.f32.mrb[0].mxu0
    %v138 = vadd.f32 %v62, %v137
    %139 = vdwg.mxu0
    %v140 = vld [vmem:[%s2] sm:$0xff]
    %v141 = vld [vmem:[%s2 + $0x8] sm:$0xff]
    %v142 = vld [vmem:[%s2 + $0x10] sm:$0xff]
    %v143 = vld [vmem:[%s2 + $0x18] sm:$0xff]
    %v144 = vld [vmem:[%s2 + $0x20] sm:$0xff]
    %v145 = vld [vmem:[%s2 + $0x28] sm:$0xff]
    %v146 = vld [vmem:[%s2 + $0x30] sm:$0xff]
    %v147 = vld [vmem:[%s2 + $0x38] sm:$0xff]
    %v148 = vld [vmem:[%s2 + $0x40] sm:$0xff]
    %v149 = vld [vmem:[%s2 + $0x48] sm:$0xff]
    %v150 = vld [vmem:[%s2 + $0x50] sm:$0xff]
    %v151 = vld [vmem:[%s2 + $0x58] sm:$0xff]
    %v152 = vld [vmem:[%s2 + $0x60] sm:$0xff]
    %v153 = vld [vmem:[%s2 + $0x68] sm:$0xff]
    %v154 = vld [vmem:[%s2 + $0x70] sm:$0xff]
    %v155 = vld [vmem:[%s2 + $0x78] sm:$0xff]
    %v156 = vlaneseq
    %v157 = vand.u32 %v156, 127
    %v158 = vadd.s32 %v157, 128
    %vm159 = vcmp.ge.s32.totalorder %v157, 128
    %vm160 = vcmp.ge.s32.totalorder %v158, 128
    %vm161 = vcmp.lt.s32.totalorder %v157, 192
    %vm162 = vcmp.lt.s32.totalorder %v158, 192
    %vm163 = vmand %vm159, %vm161
    %vm164 = vmand %vm160, %vm162
    %v165 = vsel %vm163, 1.0, 0.5
    %v166 = vsel %vm164, 1.0, 0.5
    %v167 = vsel %vm163, 0.0, 0.5
    %v168 = vsel %vm164, 0.0, 0.5
    %vm169 = vcmask 523264
    %v171 = vsel %vm169, 0.0, 0
    %173 = vmatprep.subr.mxu0 %v141
    %174 = vmatpush1.msra.mxu0 %v140
    %175 = vmatprep.subr.mxu0 %v143
    %176 = vmatpush1.msra.mxu0 %v142
    %177 = vmatprep.subr.mxu0 %v145
    %178 = vmatpush1.msra.mxu0 %v144
    %179 = vmatprep.subr.mxu0 %v147
    %180 = vmatpush1.msra.mxu0 %v146
    %181 = vmatprep.subr.mxu0 %v149
    %182 = vmatpush1.msra.mxu0 %v148
    %183 = vmatprep.subr.mxu0 %v151
    %184 = vmatpush1.msra.mxu0 %v150
    %185 = vmatprep.subr.mxu0 %v153
    %186 = vmatpush1.msra.mxu0 %v152
    %187 = vmatprep.subr.mxu0 %v155
    %188 = vmatpush1.msra.mxu0 %v154
    %189 = vmatprep.subr.mxu0 0.0
    %190 = vmatpush1.msra.mxu0 0.0
    %191 = vmatprep.subr.mxu0 0.0
    %192 = vmatpush1.msra.mxu0 0.0
    %193 = vmatprep.subr.mxu0 0.0
    %194 = vmatpush1.msra.mxu0 0.0
    %195 = vmatprep.subr.mxu0 0.0
    %196 = vmatpush1.msra.mxu0 0.0
    %197 = vmatprep.subr.mxu0 0.0
    %198 = vmatpush1.msra.mxu0 0.0
    %199 = vmatprep.subr.mxu0 0.0
    %200 = vmatpush1.msra.mxu0 0.0
    %201 = vmatprep.subr.mxu0 0.0
    %202 = vmatpush1.msra.mxu0 0.0
    %203 = vmatprep.subr.mxu0 0.0
    %204 = vmatpush1.msra.mxu0 0.0
    %205 = vmatprep.subr.mxu0 0.0
    %206 = vmatpush1.msra.mxu0 0.0
    %207 = vmatprep.subr.mxu0 0.0
    %208 = vmatpush1.msra.mxu0 0.0
    %209 = vmatprep.subr.mxu0 0.0
    %210 = vmatpush1.msra.mxu0 0.0
    %211 = vmatprep.subr.mxu0 0.0
    %212 = vmatpush1.msra.mxu0 0.0
    %213 = vmatprep.subr.mxu0 0.0
    %214 = vmatpush1.msra.mxu0 0.0
    %215 = vmatprep.subr.mxu0 0.0
    %216 = vmatpush1.msra.mxu0 0.0
    %217 = vmatprep.subr.mxu0 0.0
    %218 = vmatpush1.msra.mxu0 0.0
    %219 = vmatprep.subr.mxu0 0.0
    %220 = vmatpush1.msra.mxu0 0.0
    %221 = vmatprep.subr.mxu0 0.0
    %222 = vmatpush1.msra.mxu0 0.0
    %223 = vmatprep.subr.mxu0 0.0
    %224 = vmatpush1.msra.mxu0 0.0
    %225 = vmatprep.subr.mxu0 0.0
    %226 = vmatpush1.msra.mxu0 0.0
    %227 = vmatprep.subr.mxu0 0.0
    %228 = vmatpush1.msra.mxu0 0.0
    %229 = vmatprep.subr.mxu0 0.0
    %230 = vmatpush1.msra.mxu0 0.0
    %231 = vmatprep.subr.mxu0 0.0
    %232 = vmatpush1.msra.mxu0 0.0
    %233 = vmatprep.subr.mxu0 0.0
    %234 = vmatpush1.msra.mxu0 0.0
    %235 = vmatprep.subr.mxu0 0.0
    %236 = vmatpush1.msra.mxu0 0.0
    %237 = vmatprep.mubr.f32.mxu0 0.0
    %238 = vmatmul.mubr.f32.gmra.mrb[0].mxu0 %v171
    %v239 = vpop.f32.mrb[0].mxu0
    %v240 = vadd.f32 %v136, %v239
    %v241 = vpop.f32.mrb[0].mxu0
    %v242 = vadd.f32 %v138, %v241
    %243 = vdwg.mxu0
    %v244 = vtanh.pop %v240
    %v245 = vtanh.pop %v242
    %v246 = vmul.f32 %v244, %v165
    %v247 = vmul.f32 %v245, %v166
    %v248 = vadd.f32 %v246, %v167
    %v249 = vadd.f32 %v247, %v168
    %v250 = vmul.f32 %v248, 0.0
    %v251 = vmul.f32 %v248, %v249
    %253 = vrot.lane.b32.xlu0 %v251, 64
    %v254 = vpop.permute.xlu0 %253
    %v256 = vadd.f32 %v250, %v254
    %v257 = vtanh.pop %v256
    %v258 = vmul.f32 %v249, %v257
    %260 = vrot.lane.b32.xlu0 %v258, 64
    %v261 = vpop.permute.xlu0 %260
    %v264 = vrot.slane %v136, 1
    %v265 = vrot.slane %v138, 1
    %v268 = vsel %vm169, %v261, 0
    %270 = vmatprep.subr.mxu0 %v141
    %271 = vmatpush1.msra.mxu0 %v140
    %272 = vmatprep.subr.mxu0 %v143
    %273 = vmatpush1.msra.mxu0 %v142
    %274 = vmatprep.subr.mxu0 %v145
    %275 = vmatpush1.msra.mxu0 %v144
    %276 = vmatprep.subr.mxu0 %v147
    %277 = vmatpush1.msra.mxu0 %v146
    %278 = vmatprep.subr.mxu0 %v149
    %279 = vmatpush1.msra.mxu0 %v148
    %280 = vmatprep.subr.mxu0 %v151
    %281 = vmatpush1.msra.mxu0 %v150
    %282 = vmatprep.subr.mxu0 %v153
    %283 = vmatpush1.msra.mxu0 %v152
    %284 = vmatprep.subr.mxu0 %v155
    %285 = vmatpush1.msra.mxu0 %v154
    %286 = vmatprep.subr.mxu0 0.0
    %287 = vmatpush1.msra.mxu0 0.0
    %288 = vmatprep.subr.mxu0 0.0
    %289 = vmatpush1.msra.mxu0 0.0
    %290 = vmatprep.subr.mxu0 0.0
    %291 = vmatpush1.msra.mxu0 0.0
    %292 = vmatprep.subr.mxu0 0.0
    %293 = vmatpush1.msra.mxu0 0.0
    %294 = vmatprep.subr.mxu0 0.0
    %295 = vmatpush1.msra.mxu0 0.0
    %296 = vmatprep.subr.mxu0 0.0
    %297 = vmatpush1.msra.mxu0 0.0
    %298 = vmatprep.subr.mxu0 0.0
    %299 = vmatpush1.msra.mxu0 0.0
    %300 = vmatprep.subr.mxu0 0.0
    %301 = vmatpush1.msra.mxu0 0.0
    %302 = vmatprep.subr.mxu0 0.0
    %303 = vmatpush1.msra.mxu0 0.0
    %304 = vmatprep.subr.mxu0 0.0
    %305 = vmatpush1.msra.mxu0 0.0
    %306 = vmatprep.subr.mxu0 0.0
    %307 = vmatpush1.msra.mxu0 0.0
    %308 = vmatprep.subr.mxu0 0.0
    %309 = vmatpush1.msra.mxu0 0.0
    %310 = vmatprep.subr.mxu0 0.0
    %311 = vmatpush1.msra.mxu0 0.0
    %312 = vmatprep.subr.mxu0 0.0
    %313 = vmatpush1.msra.mxu0 0.0
    %314 = vmatprep.subr.mxu0 0.0
    %315 = vmatpush1.msra.mxu0 0.0
    %316 = vmatprep.subr.mxu0 0.0
    %317 = vmatpush1.msra.mxu0 0.0
    %318 = vmatprep.subr.mxu0 0.0
    %319 = vmatpush1.msra.mxu0 0.0
    %320 = vmatprep.subr.mxu0 0.0
    %321 = vmatpush1.msra.mxu0 0.0
    %322 = vmatprep.subr.mxu0 0.0
    %323 = vmatpush1.msra.mxu0 0.0
    %324 = vmatprep.subr.mxu0 0.0
    %325 = vmatpush1.msra.mxu0 0.0
    %326 = vmatprep.subr.mxu0 0.0
    %327 = vmatpush1.msra.mxu0 0.0
    %328 = vmatprep.subr.mxu0 0.0
    %329 = vmatpush1.msra.mxu0 0.0
    %330 = vmatprep.subr.mxu0 0.0
    %331 = vmatpush1.msra.mxu0 0.0
    %332 = vmatprep.subr.mxu0 0.0
    %333 = vmatpush1.msra.mxu0 0.0
    %334 = vmatprep.mubr.f32.mxu0 0.0
    %335 = vmatmul.mubr.f32.gmra.mrb[0].mxu0 %v268
    %v336 = vpop.f32.mrb[0].mxu0
    %v337 = vadd.f32 %v264, %v336
    %v338 = vpop.f32.mrb[0].mxu0
    %v339 = vadd.f32 %v265, %v338
    %340 = vdwg.mxu0
    %v341 = vtanh.pop %v337
    %v342 = vtanh.pop %v339
    %v343 = vmul.f32 %v341, %v165
    %v344 = vmul.f32 %v342, %v166
    %v345 = vadd.f32 %v343, %v167
    %v346 = vadd.f32 %v344, %v168
    %v347 = vmul.f32 %v345, %v256
    %v348 = vmul.f32 %v345, %v346
    %350 = vrot.lane.b32.xlu0 %v348, 64
    %v351 = vpop.permute.xlu0 %350
    %v353 = vadd.f32 %v347, %v351
    %v354 = vtanh.pop %v353
    %v355 = vmul.f32 %v346, %v354
    %357 = vrot.lane.b32.xlu0 %v355, 64
    %v358 = vpop.permute.xlu0 %357
    %v359 = vrot.slane %v136, 2
    %v360 = vrot.slane %v138, 2
    %v363 = vsel %vm169, %v358, 0
    %365 = vmatprep.subr.mxu0 %v141
    %366 = vmatpush1.msra.mxu0 %v140
    %367 = vmatprep.subr.mxu0 %v143
    %368 = vmatpush1.msra.mxu0 %v142
    %369 = vmatprep.subr.mxu0 %v145
    %370 = vmatpush1.msra.mxu0 %v144
    %371 = vmatprep.subr.mxu0 %v147
    %372 = vmatpush1.msra.mxu0 %v146
    %373 = vmatprep.subr.mxu0 %v149
    %374 = vmatpush1.msra.mxu0 %v148
    %375 = vmatprep.subr.mxu0 %v151
    %376 = vmatpush1.msra.mxu0 %v150
    %377 = vmatprep.subr.mxu0 %v153
    %378 = vmatpush1.msra.mxu0 %v152
    %379 = vmatprep.subr.mxu0 %v155
    %380 = vmatpush1.msra.mxu0 %v154
    %381 = vmatprep.subr.mxu0 0.0
    %382 = vmatpush1.msra.mxu0 0.0
    %383 = vmatprep.subr.mxu0 0.0
    %384 = vmatpush1.msra.mxu0 0.0
    %385 = vmatprep.subr.mxu0 0.0
    %386 = vmatpush1.msra.mxu0 0.0
    %387 = vmatprep.subr.mxu0 0.0
    %388 = vmatpush1.msra.mxu0 0.0
    %389 = vmatprep.subr.mxu0 0.0
    %390 = vmatpush1.msra.mxu0 0.0
    %391 = vmatprep.subr.mxu0 0.0
    %392 = vmatpush1.msra.mxu0 0.0
    %393 = vmatprep.subr.mxu0 0.0
    %394 = vmatpush1.msra.mxu0 0.0
    %395 = vmatprep.subr.mxu0 0.0
    %396 = vmatpush1.msra.mxu0 0.0
    %397 = vmatprep.subr.mxu0 0.0
    %398 = vmatpush1.msra.mxu0 0.0
    %399 = vmatprep.subr.mxu0 0.0
    %400 = vmatpush1.msra.mxu0 0.0
    %401 = vmatprep.subr.mxu0 0.0
    %402 = vmatpush1.msra.mxu0 0.0
    %403 = vmatprep.subr.mxu0 0.0
    %404 = vmatpush1.msra.mxu0 0.0
    %405 = vmatprep.subr.mxu0 0.0
    %406 = vmatpush1.msra.mxu0 0.0
    %407 = vmatprep.subr.mxu0 0.0
    %408 = vmatpush1.msra.mxu0 0.0
    %409 = vmatprep.subr.mxu0 0.0
    %410 = vmatpush1.msra.mxu0 0.0
    %411 = vmatprep.subr.mxu0 0.0
    %412 = vmatpush1.msra.mxu0 0.0
    %413 = vmatprep.subr.mxu0 0.0
    %414 = vmatpush1.msra.mxu0 0.0
    %415 = vmatprep.subr.mxu0 0.0
    %416 = vmatpush1.msra.mxu0 0.0
    %417 = vmatprep.subr.mxu0 0.0
    %418 = vmatpush1.msra.mxu0 0.0
    %419 = vmatprep.subr.mxu0 0.0
    %420 = vmatpush1.msra.mxu0 0.0
    %421 = vmatprep.subr.mxu0 0.0
    %422 = vmatpush1.msra.mxu0 0.0
    %423 = vmatprep.subr.mxu0 0.0
    %424 = vmatpush1.msra.mxu0 0.0
    %425 = vmatprep.subr.mxu0 0.0
    %426 = vmatpush1.msra.mxu0 0.0
    %427 = vmatprep.subr.mxu0 0.0
    %428 = vmatpush1.msra.mxu0 0.0
    %429 = vmatprep.mubr.f32.mxu0 0.0
    %430 = vmatmul.mubr.f32.gmra.mrb[0].mxu0 %v363
    %v431 = vpop.f32.mrb[0].mxu0
    %v432 = vadd.f32 %v359, %v431
    %v433 = vpop.f32.mrb[0].mxu0
    %v434 = vadd.f32 %v360, %v433
    %435 = vdwg.mxu0
    %v436 = vtanh.pop %v432
    %v437 = vtanh.pop %v434
    %v438 = vmul.f32 %v436, %v165
    %v439 = vmul.f32 %v437, %v166
    %v440 = vadd.f32 %v438, %v167
    %v441 = vadd.f32 %v439, %v168
    %v442 = vmul.f32 %v440, %v353
    %v443 = vmul.f32 %v440, %v441
    %445 = vrot.lane.b32.xlu0 %v443, 64
    %v446 = vpop.permute.xlu0 %445
    %v448 = vadd.f32 %v442, %v446
    %v449 = vtanh.pop %v448
    %v450 = vmul.f32 %v441, %v449
    %452 = vrot.lane.b32.xlu0 %v450, 64
    %v453 = vpop.permute.xlu0 %452
    %v454 = vrot.slane %v136, 3
    %v455 = vrot.slane %v138, 3
    %v458 = vsel %vm169, %v453, 0
    %460 = vmatprep.subr.mxu0 %v141
    %461 = vmatpush1.msra.mxu0 %v140
    %462 = vmatprep.subr.mxu0 %v143
    %463 = vmatpush1.msra.mxu0 %v142
    %464 = vmatprep.subr.mxu0 %v145
    %465 = vmatpush1.msra.mxu0 %v144
    %466 = vmatprep.subr.mxu0 %v147
    %467 = vmatpush1.msra.mxu0 %v146
    %468 = vmatprep.subr.mxu0 %v149
    %469 = vmatpush1.msra.mxu0 %v148
    %470 = vmatprep.subr.mxu0 %v151
    %471 = vmatpush1.msra.mxu0 %v150
    %472 = vmatprep.subr.mxu0 %v153
    %473 = vmatpush1.msra.mxu0 %v152
    %474 = vmatprep.subr.mxu0 %v155
    %475 = vmatpush1.msra.mxu0 %v154
    %476 = vmatprep.subr.mxu0 0.0
    %477 = vmatpush1.msra.mxu0 0.0
    %478 = vmatprep.subr.mxu0 0.0
    %479 = vmatpush1.msra.mxu0 0.0
    %480 = vmatprep.subr.mxu0 0.0
    %481 = vmatpush1.msra.mxu0 0.0
    %482 = vmatprep.subr.mxu0 0.0
    %483 = vmatpush1.msra.mxu0 0.0
    %484 = vmatprep.subr.mxu0 0.0
    %485 = vmatpush1.msra.mxu0 0.0
    %486 = vmatprep.subr.mxu0 0.0
    %487 = vmatpush1.msra.mxu0 0.0
    %488 = vmatprep.subr.mxu0 0.0
    %489 = vmatpush1.msra.mxu0 0.0
    %490 = vmatprep.subr.mxu0 0.0
    %491 = vmatpush1.msra.mxu0 0.0
    %492 = vmatprep.subr.mxu0 0.0
    %493 = vmatpush1.msra.mxu0 0.0
    %494 = vmatprep.subr.mxu0 0.0
    %495 = vmatpush1.msra.mxu0 0.0
    %496 = vmatprep.subr.mxu0 0.0
    %497 = vmatpush1.msra.mxu0 0.0
    %498 = vmatprep.subr.mxu0 0.0
    %499 = vmatpush1.msra.mxu0 0.0
    %500 = vmatprep.subr.mxu0 0.0
    %501 = vmatpush1.msra.mxu0 0.0
    %502 = vmatprep.subr.mxu0 0.0
    %503 = vmatpush1.msra.mxu0 0.0
    %504 = vmatprep.subr.mxu0 0.0
    %505 = vmatpush1.msra.mxu0 0.0
    %506 = vmatprep.subr.mxu0 0.0
    %507 = vmatpush1.msra.mxu0 0.0
    %508 = vmatprep.subr.mxu0 0.0
    %509 = vmatpush1.msra.mxu0 0.0
    %510 = vmatprep.subr.mxu0 0.0
    %511 = vmatpush1.msra.mxu0 0.0
    %512 = vmatprep.subr.mxu0 0.0
    %513 = vmatpush1.msra.mxu0 0.0
    %514 = vmatprep.subr.mxu0 0.0
    %515 = vmatpush1.msra.mxu0 0.0
    %516 = vmatprep.subr.mxu0 0.0
    %517 = vmatpush1.msra.mxu0 0.0
    %518 = vmatprep.subr.mxu0 0.0
    %519 = vmatpush1.msra.mxu0 0.0
    %520 = vmatprep.subr.mxu0 0.0
    %521 = vmatpush1.msra.mxu0 0.0
    %522 = vmatprep.subr.mxu0 0.0
    %523 = vmatpush1.msra.mxu0 0.0
    %524 = vmatprep.mubr.f32.mxu0 0.0
    %525 = vmatmul.mubr.f32.gmra.mrb[0].mxu0 %v458
    %v526 = vpop.f32.mrb[0].mxu0
    %v527 = vadd.f32 %v454, %v526
    %v528 = vpop.f32.mrb[0].mxu0
    %v529 = vadd.f32 %v455, %v528
    %530 = vdwg.mxu0
    %v531 = vtanh.pop %v527
    %v532 = vtanh.pop %v529
    %v533 = vmul.f32 %v531, %v165
    %v534 = vmul.f32 %v532, %v166
    %v535 = vadd.f32 %v533, %v167
    %v536 = vadd.f32 %v534, %v168
    %v537 = vmul.f32 %v535, %v448
    %v538 = vmul.f32 %v535, %v536
    %540 = vrot.lane.b32.xlu0 %v538, 64
    %v541 = vpop.permute.xlu0 %540
    %v543 = vadd.f32 %v537, %v541
    %v544 = vtanh.pop %v543
    %v545 = vmul.f32 %v536, %v544
    %547 = vrot.lane.b32.xlu0 %v545, 64
    %v548 = vpop.permute.xlu0 %547
    %v549 = vrot.slane %v136, 4
    %v550 = vrot.slane %v138, 4
    %v553 = vsel %vm169, %v548, 0
    %555 = vmatprep.subr.mxu0 %v141
    %556 = vmatpush1.msra.mxu0 %v140
    %557 = vmatprep.subr.mxu0 %v143
    %558 = vmatpush1.msra.mxu0 %v142
    %559 = vmatprep.subr.mxu0 %v145
    %560 = vmatpush1.msra.mxu0 %v144
    %561 = vmatprep.subr.mxu0 %v147
    %562 = vmatpush1.msra.mxu0 %v146
    %563 = vmatprep.subr.mxu0 %v149
    %564 = vmatpush1.msra.mxu0 %v148
    %565 = vmatprep.subr.mxu0 %v151
    %566 = vmatpush1.msra.mxu0 %v150
    %567 = vmatprep.subr.mxu0 %v153
    %568 = vmatpush1.msra.mxu0 %v152
    %569 = vmatprep.subr.mxu0 %v155
    %570 = vmatpush1.msra.mxu0 %v154
    %571 = vmatprep.subr.mxu0 0.0
    %572 = vmatpush1.msra.mxu0 0.0
    %573 = vmatprep.subr.mxu0 0.0
    %574 = vmatpush1.msra.mxu0 0.0
    %575 = vmatprep.subr.mxu0 0.0
    %576 = vmatpush1.msra.mxu0 0.0
    %577 = vmatprep.subr.mxu0 0.0
    %578 = vmatpush1.msra.mxu0 0.0
    %579 = vmatprep.subr.mxu0 0.0
    %580 = vmatpush1.msra.mxu0 0.0
    %581 = vmatprep.subr.mxu0 0.0
    %582 = vmatpush1.msra.mxu0 0.0
    %583 = vmatprep.subr.mxu0 0.0
    %584 = vmatpush1.msra.mxu0 0.0
    %585 = vmatprep.subr.mxu0 0.0
    %586 = vmatpush1.msra.mxu0 0.0
    %587 = vmatprep.subr.mxu0 0.0
    %588 = vmatpush1.msra.mxu0 0.0
    %589 = vmatprep.subr.mxu0 0.0
    %590 = vmatpush1.msra.mxu0 0.0
    %591 = vmatprep.subr.mxu0 0.0
    %592 = vmatpush1.msra.mxu0 0.0
    %593 = vmatprep.subr.mxu0 0.0
    %594 = vmatpush1.msra.mxu0 0.0
    %595 = vmatprep.subr.mxu0 0.0
    %596 = vmatpush1.msra.mxu0 0.0
    %597 = vmatprep.subr.mxu0 0.0
    %598 = vmatpush1.msra.mxu0 0.0
    %599 = vmatprep.subr.mxu0 0.0
    %600 = vmatpush1.msra.mxu0 0.0
    %601 = vmatprep.subr.mxu0 0.0
    %602 = vmatpush1.msra.mxu0 0.0
    %603 = vmatprep.subr.mxu0 0.0
    %604 = vmatpush1.msra.mxu0 0.0
    %605 = vmatprep.subr.mxu0 0.0
    %606 = vmatpush1.msra.mxu0 0.0
    %607 = vmatprep.subr.mxu0 0.0
    %608 = vmatpush1.msra.mxu0 0.0
    %609 = vmatprep.subr.mxu0 0.0
    %610 = vmatpush1.msra.mxu0 0.0
    %611 = vmatprep.subr.mxu0 0.0
    %612 = vmatpush1.msra.mxu0 0.0
    %613 = vmatprep.subr.mxu0 0.0
    %614 = vmatpush1.msra.mxu0 0.0
    %615 = vmatprep.subr.mxu0 0.0
    %616 = vmatpush1.msra.mxu0 0.0
    %617 = vmatprep.subr.mxu0 0.0
    %618 = vmatpush1.msra.mxu0 0.0
    %619 = vmatprep.mubr.f32.mxu0 0.0
    %620 = vmatmul.mubr.f32.gmra.mrb[0].mxu0 %v553
    %v621 = vpop.f32.mrb[0].mxu0
    %v622 = vadd.f32 %v549, %v621
    %v623 = vpop.f32.mrb[0].mxu0
    %v624 = vadd.f32 %v550, %v623
    %625 = vdwg.mxu0
    %v626 = vtanh.pop %v622
    %v627 = vtanh.pop %v624
    %v628 = vmul.f32 %v626, %v165
    %v629 = vmul.f32 %v627, %v166
    %v630 = vadd.f32 %v628, %v167
    %v631 = vadd.f32 %v629, %v168
    %v632 = vmul.f32 %v630, %v543
    %v633 = vmul.f32 %v630, %v631
    %635 = vrot.lane.b32.xlu0 %v633, 64
    %v636 = vpop.permute.xlu0 %635
    %v638 = vadd.f32 %v632, %v636
    %v639 = vtanh.pop %v638
    %v640 = vmul.f32 %v631, %v639
    %642 = vrot.lane.b32.xlu0 %v640, 64
    %v643 = vpop.permute.xlu0 %642
    %v644 = vrot.slane %v136, 5
    %v645 = vrot.slane %v138, 5
    %v648 = vsel %vm169, %v643, 0
    %650 = vmatprep.subr.mxu0 %v141
    %651 = vmatpush1.msra.mxu0 %v140
    %652 = vmatprep.subr.mxu0 %v143
    %653 = vmatpush1.msra.mxu0 %v142
    %654 = vmatprep.subr.mxu0 %v145
    %655 = vmatpush1.msra.mxu0 %v144
    %656 = vmatprep.subr.mxu0 %v147
    %657 = vmatpush1.msra.mxu0 %v146
    %658 = vmatprep.subr.mxu0 %v149
    %659 = vmatpush1.msra.mxu0 %v148
    %660 = vmatprep.subr.mxu0 %v151
    %661 = vmatpush1.msra.mxu0 %v150
    %662 = vmatprep.subr.mxu0 %v153
    %663 = vmatpush1.msra.mxu0 %v152
    %664 = vmatprep.subr.mxu0 %v155
    %665 = vmatpush1.msra.mxu0 %v154
    %666 = vmatprep.subr.mxu0 0.0
    %667 = vmatpush1.msra.mxu0 0.0
    %668 = vmatprep.subr.mxu0 0.0
    %669 = vmatpush1.msra.mxu0 0.0
    %670 = vmatprep.subr.mxu0 0.0
    %671 = vmatpush1.msra.mxu0 0.0
    %672 = vmatprep.subr.mxu0 0.0
    %673 = vmatpush1.msra.mxu0 0.0
    %674 = vmatprep.subr.mxu0 0.0
    %675 = vmatpush1.msra.mxu0 0.0
    %676 = vmatprep.subr.mxu0 0.0
    %677 = vmatpush1.msra.mxu0 0.0
    %678 = vmatprep.subr.mxu0 0.0
    %679 = vmatpush1.msra.mxu0 0.0
    %680 = vmatprep.subr.mxu0 0.0
    %681 = vmatpush1.msra.mxu0 0.0
    %682 = vmatprep.subr.mxu0 0.0
    %683 = vmatpush1.msra.mxu0 0.0
    %684 = vmatprep.subr.mxu0 0.0
    %685 = vmatpush1.msra.mxu0 0.0
    %686 = vmatprep.subr.mxu0 0.0
    %687 = vmatpush1.msra.mxu0 0.0
    %688 = vmatprep.subr.mxu0 0.0
    %689 = vmatpush1.msra.mxu0 0.0
    %690 = vmatprep.subr.mxu0 0.0
    %691 = vmatpush1.msra.mxu0 0.0
    %692 = vmatprep.subr.mxu0 0.0
    %693 = vmatpush1.msra.mxu0 0.0
    %694 = vmatprep.subr.mxu0 0.0
    %695 = vmatpush1.msra.mxu0 0.0
    %696 = vmatprep.subr.mxu0 0.0
    %697 = vmatpush1.msra.mxu0 0.0
    %698 = vmatprep.subr.mxu0 0.0
    %699 = vmatpush1.msra.mxu0 0.0
    %700 = vmatprep.subr.mxu0 0.0
    %701 = vmatpush1.msra.mxu0 0.0
    %702 = vmatprep.subr.mxu0 0.0
    %703 = vmatpush1.msra.mxu0 0.0
    %704 = vmatprep.subr.mxu0 0.0
    %705 = vmatpush1.msra.mxu0 0.0
    %706 = vmatprep.subr.mxu0 0.0
    %707 = vmatpush1.msra.mxu0 0.0
    %708 = vmatprep.subr.mxu0 0.0
    %709 = vmatpush1.msra.mxu0 0.0
    %710 = vmatprep.subr.mxu0 0.0
    %711 = vmatpush1.msra.mxu0 0.0
    %712 = vmatprep.subr.mxu0 0.0
    %713 = vmatpush1.msra.mxu0 0.0
    %714 = vmatprep.mubr.f32.mxu0 0.0
    %715 = vmatmul.mubr.f32.gmra.mrb[0].mxu0 %v648
    %v716 = vpop.f32.mrb[0].mxu0
    %v717 = vadd.f32 %v644, %v716
    %v718 = vpop.f32.mrb[0].mxu0
    %v719 = vadd.f32 %v645, %v718
    %720 = vdwg.mxu0
    %v721 = vtanh.pop %v717
    %v722 = vtanh.pop %v719
    %v723 = vmul.f32 %v721, %v165
    %v724 = vmul.f32 %v722, %v166
    %v725 = vadd.f32 %v723, %v167
    %v726 = vadd.f32 %v724, %v168
    %v727 = vmul.f32 %v725, %v638
    %v728 = vmul.f32 %v725, %v726
    %730 = vrot.lane.b32.xlu0 %v728, 64
    %v731 = vpop.permute.xlu0 %730
    %v733 = vadd.f32 %v727, %v731
    %v734 = vtanh.pop %v733
    %v735 = vmul.f32 %v726, %v734
    %737 = vrot.lane.b32.xlu0 %v735, 64
    %v738 = vpop.permute.xlu0 %737
    %v739 = vrot.slane %v136, 6
    %v740 = vrot.slane %v138, 6
    %v743 = vsel %vm169, %v738, 0
    %745 = vmatprep.subr.mxu0 %v141
    %746 = vmatpush1.msra.mxu0 %v140
    %747 = vmatprep.subr.mxu0 %v143
    %748 = vmatpush1.msra.mxu0 %v142
    %749 = vmatprep.subr.mxu0 %v145
    %750 = vmatpush1.msra.mxu0 %v144
    %751 = vmatprep.subr.mxu0 %v147
    %752 = vmatpush1.msra.mxu0 %v146
    %753 = vmatprep.subr.mxu0 %v149
    %754 = vmatpush1.msra.mxu0 %v148
    %755 = vmatprep.subr.mxu0 %v151
    %756 = vmatpush1.msra.mxu0 %v150
    %757 = vmatprep.subr.mxu0 %v153
    %758 = vmatpush1.msra.mxu0 %v152
    %759 = vmatprep.subr.mxu0 %v155
    %760 = vmatpush1.msra.mxu0 %v154
    %761 = vmatprep.subr.mxu0 0.0
    %762 = vmatpush1.msra.mxu0 0.0
    %763 = vmatprep.subr.mxu0 0.0
    %764 = vmatpush1.msra.mxu0 0.0
    %765 = vmatprep.subr.mxu0 0.0
    %766 = vmatpush1.msra.mxu0 0.0
    %767 = vmatprep.subr.mxu0 0.0
    %768 = vmatpush1.msra.mxu0 0.0
    %769 = vmatprep.subr.mxu0 0.0
    %770 = vmatpush1.msra.mxu0 0.0
    %771 = vmatprep.subr.mxu0 0.0
    %772 = vmatpush1.msra.mxu0 0.0
    %773 = vmatprep.subr.mxu0 0.0
    %774 = vmatpush1.msra.mxu0 0.0
    %775 = vmatprep.subr.mxu0 0.0
    %776 = vmatpush1.msra.mxu0 0.0
    %777 = vmatprep.subr.mxu0 0.0
    %778 = vmatpush1.msra.mxu0 0.0
    %779 = vmatprep.subr.mxu0 0.0
    %780 = vmatpush1.msra.mxu0 0.0
    %781 = vmatprep.subr.mxu0 0.0
    %782 = vmatpush1.msra.mxu0 0.0
    %783 = vmatprep.subr.mxu0 0.0
    %784 = vmatpush1.msra.mxu0 0.0
    %785 = vmatprep.subr.mxu0 0.0
    %786 = vmatpush1.msra.mxu0 0.0
    %787 = vmatprep.subr.mxu0 0.0
    %788 = vmatpush1.msra.mxu0 0.0
    %789 = vmatprep.subr.mxu0 0.0
    %790 = vmatpush1.msra.mxu0 0.0
    %791 = vmatprep.subr.mxu0 0.0
    %792 = vmatpush1.msra.mxu0 0.0
    %793 = vmatprep.subr.mxu0 0.0
    %794 = vmatpush1.msra.mxu0 0.0
    %795 = vmatprep.subr.mxu0 0.0
    %796 = vmatpush1.msra.mxu0 0.0
    %797 = vmatprep.subr.mxu0 0.0
    %798 = vmatpush1.msra.mxu0 0.0
    %799 = vmatprep.subr.mxu0 0.0
    %800 = vmatpush1.msra.mxu0 0.0
    %801 = vmatprep.subr.mxu0 0.0
    %802 = vmatpush1.msra.mxu0 0.0
    %803 = vmatprep.subr.mxu0 0.0
    %804 = vmatpush1.msra.mxu0 0.0
    %805 = vmatprep.subr.mxu0 0.0
    %806 = vmatpush1.msra.mxu0 0.0
    %807 = vmatprep.subr.mxu0 0.0
    %808 = vmatpush1.msra.mxu0 0.0
    %809 = vmatprep.mubr.f32.mxu0 0.0
    %810 = vmatmul.mubr.f32.gmra.mrb[0].mxu0 %v743
    %v811 = vpop.f32.mrb[0].mxu0
    %v812 = vadd.f32 %v739, %v811
    %v813 = vpop.f32.mrb[0].mxu0
    %v814 = vadd.f32 %v740, %v813
    %815 = vdwg.mxu0
    %v816 = vtanh.pop %v812
    %v817 = vtanh.pop %v814
    %v818 = vmul.f32 %v816, %v165
    %v819 = vmul.f32 %v817, %v166
    %v820 = vadd.f32 %v818, %v167
    %v821 = vadd.f32 %v819, %v168
    %v822 = vmul.f32 %v820, %v733
    %v823 = vmul.f32 %v820, %v821
    %825 = vrot.lane.b32.xlu0 %v823, 64
    %v826 = vpop.permute.xlu0 %825
    %v828 = vadd.f32 %v822, %v826
    %v829 = vtanh.pop %v828
    %v830 = vmul.f32 %v821, %v829
    %832 = vrot.lane.b32.xlu0 %v830, 64
    %v833 = vpop.permute.xlu0 %832
    %v834 = vrot.slane %v136, 7
    %v835 = vrot.slane %v138, 7
    %v838 = vsel %vm169, %v833, 0
    %840 = vmatprep.subr.mxu0 %v141
    %841 = vmatpush1.msra.mxu0 %v140
    %842 = vmatprep.subr.mxu0 %v143
    %843 = vmatpush1.msra.mxu0 %v142
    %844 = vmatprep.subr.mxu0 %v145
    %845 = vmatpush1.msra.mxu0 %v144
    %846 = vmatprep.subr.mxu0 %v147
    %847 = vmatpush1.msra.mxu0 %v146
    %848 = vmatprep.subr.mxu0 %v149
    %849 = vmatpush1.msra.mxu0 %v148
    %850 = vmatprep.subr.mxu0 %v151
    %851 = vmatpush1.msra.mxu0 %v150
    %852 = vmatprep.subr.mxu0 %v153
    %853 = vmatpush1.msra.mxu0 %v152
    %854 = vmatprep.subr.mxu0 %v155
    %855 = vmatpush1.msra.mxu0 %v154
    %856 = vmatprep.subr.mxu0 0.0
    %857 = vmatpush1.msra.mxu0 0.0
    %858 = vmatprep.subr.mxu0 0.0
    %859 = vmatpush1.msra.mxu0 0.0
    %860 = vmatprep.subr.mxu0 0.0
    %861 = vmatpush1.msra.mxu0 0.0
    %862 = vmatprep.subr.mxu0 0.0
    %863 = vmatpush1.msra.mxu0 0.0
    %864 = vmatprep.subr.mxu0 0.0
    %865 = vmatpush1.msra.mxu0 0.0
    %866 = vmatprep.subr.mxu0 0.0
    %867 = vmatpush1.msra.mxu0 0.0
    %868 = vmatprep.subr.mxu0 0.0
    %869 = vmatpush1.msra.mxu0 0.0
    %870 = vmatprep.subr.mxu0 0.0
    %871 = vmatpush1.msra.mxu0 0.0
    %872 = vmatprep.subr.mxu0 0.0
    %873 = vmatpush1.msra.mxu0 0.0
    %874 = vmatprep.subr.mxu0 0.0
    %875 = vmatpush1.msra.mxu0 0.0
    %876 = vmatprep.subr.mxu0 0.0
    %877 = vmatpush1.msra.mxu0 0.0
    %878 = vmatprep.subr.mxu0 0.0
    %879 = vmatpush1.msra.mxu0 0.0
    %880 = vmatprep.subr.mxu0 0.0
    %881 = vmatpush1.msra.mxu0 0.0
    %882 = vmatprep.subr.mxu0 0.0
    %883 = vmatpush1.msra.mxu0 0.0
    %884 = vmatprep.subr.mxu0 0.0
    %885 = vmatpush1.msra.mxu0 0.0
    %886 = vmatprep.subr.mxu0 0.0
    %887 = vmatpush1.msra.mxu0 0.0
    %888 = vmatprep.subr.mxu0 0.0
    %889 = vmatpush1.msra.mxu0 0.0
    %890 = vmatprep.subr.mxu0 0.0
    %891 = vmatpush1.msra.mxu0 0.0
    %892 = vmatprep.subr.mxu0 0.0
    %893 = vmatpush1.msra.mxu0 0.0
    %894 = vmatprep.subr.mxu0 0.0
    %895 = vmatpush1.msra.mxu0 0.0
    %896 = vmatprep.subr.mxu0 0.0
    %897 = vmatpush1.msra.mxu0 0.0
    %898 = vmatprep.subr.mxu0 0.0
    %899 = vmatpush1.msra.mxu0 0.0
    %900 = vmatprep.subr.mxu0 0.0
    %901 = vmatpush1.msra.mxu0 0.0
    %902 = vmatprep.subr.mxu0 0.0
    %903 = vmatpush1.msra.mxu0 0.0
    %904 = vmatprep.mubr.f32.mxu0 0.0
    %905 = vmatmul.mubr.f32.gmra.mrb[0].mxu0 %v838
    %v906 = vpop.f32.mrb[0].mxu0
    %v907 = vadd.f32 %v834, %v906
    %v908 = vpop.f32.mrb[0].mxu0
    %v909 = vadd.f32 %v835, %v908
    %910 = vdwg.mxu0
    %v911 = vtanh.pop %v907
    %v912 = vtanh.pop %v909
    %v913 = vmul.f32 %v911, %v165
    %v914 = vmul.f32 %v912, %v166
    %v915 = vadd.f32 %v913, %v167
    %v916 = vadd.f32 %v914, %v168
    %v917 = vmul.f32 %v915, %v828
    %v918 = vmul.f32 %v915, %v916
    %920 = vrot.lane.b32.xlu0 %v918, 64
    %v921 = vpop.permute.xlu0 %920
    %v923 = vadd.f32 %v917, %v921
    %v924 = vtanh.pop %v923
    %v925 = vmul.f32 %v916, %v924
    %v926 = vrot.slane %v355, 7
    %v928 = vrot.slane %v450, 6
    %v930 = vrot.slane %v545, 5
    %v932 = vrot.slane %v640, 4
    %v934 = vrot.slane %v735, 3
    %v936 = vrot.slane %v830, 2
    %v939 = vrot.slane %v925, 1
    %vm941 = vcmask 1040384
    %v942 = vsel %vm941, %v258, %v926
    %vm943 = vcmask 1041408
    %v944 = vsel %vm943, %v942, %v928
    %vm945 = vcmask 1042432
    %v946 = vsel %vm945, %v944, %v930
    %vm947 = vcmask 1043456
    %v948 = vsel %vm947, %v946, %v932
    %vm949 = vcmask 1044480
    %v950 = vsel %vm949, %v948, %v934
    %vm951 = vcmask 1045504
    %v952 = vsel %vm951, %v950, %v936
    %vm953 = vcmask 1046528
    %v954 = vsel %vm953, %v952, %v939
    %v955 = vrot.slane %v830, 7
    %v957 = vrot.slane %v735, 6
    %v959 = vrot.slane %v640, 5
    %v961 = vrot.slane %v545, 4
    %v963 = vrot.slane %v450, 3
    %v965 = vrot.slane %v355, 2
    %v967 = vrot.slane %v258, 1
    %v969 = vsel %vm941, %v925, %v955
    %v970 = vsel %vm943, %v969, %v957
    %v971 = vsel %vm945, %v970, %v959
    %v972 = vsel %vm947, %v971, %v961
    %v973 = vsel %vm949, %v972, %v963
    %v974 = vsel %vm951, %v973, %v965
    %v975 = vsel %vm953, %v974, %v967
    %977 = vrot.lane.b32.xlu0 %v954, 64
    %v978 = vpop.permute.xlu0 %977
    %981 = vrot.lane.b32.xlu0 %v975, 64
    %v982 = vpop.permute.xlu0 %981
    %v984 = vsel %vm65, %v978, %v982
    %v985 = vld [vmem:[%s4] sm:$0xff]
    %v986 = vld [vmem:[%s4 + $0x8] sm:$0xff]
    %v987 = vld [vmem:[%s4 + $0x10] sm:$0xff]
    %v988 = vld [vmem:[%s4 + $0x18] sm:$0xff]
    %v989 = vld [vmem:[%s4 + $0x20] sm:$0xff]
    %v990 = vld [vmem:[%s4 + $0x28] sm:$0xff]
    %v991 = vld [vmem:[%s4 + $0x30] sm:$0xff]
    %v992 = vld [vmem:[%s4 + $0x38] sm:$0xff]
    %v993 = vld [vmem:[%s5] sm:$0x1]
    %v995 = vlaneseq
    %v996 = vshrl.u32 %v995, 7
    %v997 = vsub.s32 0, %v996
    %v998 = vrot.slane %v993, %v997
    %v1001 = vsel %vm169, %v984, 0
    %1003 = vmatprep.subr.mxu0 0.0
    %1004 = vmatpush1.msra.mxu0 %v985
    %1005 = vmatprep.subr.mxu0 0.0
    %1006 = vmatpush1.msra.mxu0 %v986
    %1007 = vmatprep.subr.mxu0 0.0
    %1008 = vmatpush1.msra.mxu0 %v987
    %1009 = vmatprep.subr.mxu0 0.0
    %1010 = vmatpush1.msra.mxu0 %v988
    %1011 = vmatprep.subr.mxu0 0.0
    %1012 = vmatpush1.msra.mxu0 %v989
    %1013 = vmatprep.subr.mxu0 0.0
    %1014 = vmatpush1.msra.mxu0 %v990
    %1015 = vmatprep.subr.mxu0 0.0
    %1016 = vmatpush1.msra.mxu0 %v991
    %1017 = vmatprep.subr.mxu0 0.0
    %1018 = vmatpush1.msra.mxu0 %v992
    %1019 = vmatprep.subr.mxu0 0.0
    %1020 = vmatpush1.msra.mxu0 0.0
    %1021 = vmatprep.subr.mxu0 0.0
    %1022 = vmatpush1.msra.mxu0 0.0
    %1023 = vmatprep.subr.mxu0 0.0
    %1024 = vmatpush1.msra.mxu0 0.0
    %1025 = vmatprep.subr.mxu0 0.0
    %1026 = vmatpush1.msra.mxu0 0.0
    %1027 = vmatprep.subr.mxu0 0.0
    %1028 = vmatpush1.msra.mxu0 0.0
    %1029 = vmatprep.subr.mxu0 0.0
    %1030 = vmatpush1.msra.mxu0 0.0
    %1031 = vmatprep.subr.mxu0 0.0
    %1032 = vmatpush1.msra.mxu0 0.0
    %1033 = vmatprep.subr.mxu0 0.0
    %1034 = vmatpush1.msra.mxu0 0.0
    %1035 = vmatprep.subr.mxu0 0.0
    %1036 = vmatpush1.msra.mxu0 0.0
    %1037 = vmatprep.subr.mxu0 0.0
    %1038 = vmatpush1.msra.mxu0 0.0
    %1039 = vmatprep.subr.mxu0 0.0
    %1040 = vmatpush1.msra.mxu0 0.0
    %1041 = vmatprep.subr.mxu0 0.0
    %1042 = vmatpush1.msra.mxu0 0.0
    %1043 = vmatprep.subr.mxu0 0.0
    %1044 = vmatpush1.msra.mxu0 0.0
    %1045 = vmatprep.subr.mxu0 0.0
    %1046 = vmatpush1.msra.mxu0 0.0
    %1047 = vmatprep.subr.mxu0 0.0
    %1048 = vmatpush1.msra.mxu0 0.0
    %1049 = vmatprep.subr.mxu0 0.0
    %1050 = vmatpush1.msra.mxu0 0.0
    %1051 = vmatprep.subr.mxu0 0.0
    %1052 = vmatpush1.msra.mxu0 0.0
    %1053 = vmatprep.subr.mxu0 0.0
    %1054 = vmatpush1.msra.mxu0 0.0
    %1055 = vmatprep.subr.mxu0 0.0
    %1056 = vmatpush1.msra.mxu0 0.0
    %1057 = vmatprep.subr.mxu0 0.0
    %1058 = vmatpush1.msra.mxu0 0.0
    %1059 = vmatprep.subr.mxu0 0.0
    %1060 = vmatpush1.msra.mxu0 0.0
    %1061 = vmatprep.subr.mxu0 0.0
    %1062 = vmatpush1.msra.mxu0 0.0
    %1063 = vmatprep.subr.mxu0 0.0
    %1064 = vmatpush1.msra.mxu0 0.0
    %1065 = vmatprep.subr.mxu0 0.0
    %1066 = vmatpush1.msra.mxu0 0.0
    %1067 = vmatprep.mubr.f32.mxu0 0.0
    %1068 = vmatmul.mubr.f32.gmra.mrb[0].mxu0 %v1001
    %v1069 = vpop.f32.mrb[0].mxu0
    %v1070 = vadd.f32 %v998, %v1069
    %v1071 = vpop.f32.mrb[0].mxu0
    %1072 = vdwg.mxu0
    %v1073 = vtanh.pop %v1070
    %v1074 = vld [vmem:[%s6] sm:$0xff]
    %v1075 = vld [vmem:[%s6 + $0x8] sm:$0xff]
    %v1076 = vld [vmem:[%s6 + $0x10] sm:$0xff]
    %v1077 = vld [vmem:[%s6 + $0x18] sm:$0x3f]
    %v1078 = vld [vmem:[%s7] sm:$0x1]
    %v1080 = vlaneseq
    %v1081 = vshrl.u32 %v1080, 7
    %v1082 = vsub.s32 0, %v1081
    %v1083 = vrot.slane %v1078, %v1082
    %vm1085 = vcmask 244736
    %v1087 = vsel %vm1085, %v1073, 0
    %v1090 = vsel %vm951, %v1077, 0
    %1092 = vmatprep.subr.mxu0 0.0
    %1093 = vmatpush1.msra.mxu0 %v1074
    %1094 = vmatprep.subr.mxu0 0.0
    %1095 = vmatpush1.msra.mxu0 %v1075
    %1096 = vmatprep.subr.mxu0 0.0
    %1097 = vmatpush1.msra.mxu0 %v1076
    %1098 = vmatprep.subr.mxu0 0.0
    %1099 = vmatpush1.msra.mxu0 %v1090
    %1100 = vmatprep.subr.mxu0 0.0
    %1101 = vmatpush1.msra.mxu0 0.0
    %1102 = vmatprep.subr.mxu0 0.0
    %1103 = vmatpush1.msra.mxu0 0.0
    %1104 = vmatprep.subr.mxu0 0.0
    %1105 = vmatpush1.msra.mxu0 0.0
    %1106 = vmatprep.subr.mxu0 0.0
    %1107 = vmatpush1.msra.mxu0 0.0
    %1108 = vmatprep.subr.mxu0 0.0
    %1109 = vmatpush1.msra.mxu0 0.0
    %1110 = vmatprep.subr.mxu0 0.0
    %1111 = vmatpush1.msra.mxu0 0.0
    %1112 = vmatprep.subr.mxu0 0.0
    %1113 = vmatpush1.msra.mxu0 0.0
    %1114 = vmatprep.subr.mxu0 0.0
    %1115 = vmatpush1.msra.mxu0 0.0
    %1116 = vmatprep.subr.mxu0 0.0
    %1117 = vmatpush1.msra.mxu0 0.0
    %1118 = vmatprep.subr.mxu0 0.0
    %1119 = vmatpush1.msra.mxu0 0.0
    %1120 = vmatprep.subr.mxu0 0.0
    %1121 = vmatpush1.msra.mxu0 0.0
    %1122 = vmatprep.subr.mxu0 0.0
    %1123 = vmatpush1.msra.mxu0 0.0
    %1124 = vmatprep.subr.mxu0 0.0
    %1125 = vmatpush1.msra.mxu0 0.0
    %1126 = vmatprep.subr.mxu0 0.0
    %1127 = vmatpush1.msra.mxu0 0.0
    %1128 = vmatprep.subr.mxu0 0.0
    %1129 = vmatpush1.msra.mxu0 0.0
    %1130 = vmatprep.subr.mxu0 0.0
    %1131 = vmatpush1.msra.mxu0 0.0
    %1132 = vmatprep.subr.mxu0 0.0
    %1133 = vmatpush1.msra.mxu0 0.0
    %1134 = vmatprep.subr.mxu0 0.0
    %1135 = vmatpush1.msra.mxu0 0.0
    %1136 = vmatprep.subr.mxu0 0.0
    %1137 = vmatpush1.msra.mxu0 0.0
    %1138 = vmatprep.subr.mxu0 0.0
    %1139 = vmatpush1.msra.mxu0 0.0
    %1140 = vmatprep.subr.mxu0 0.0
    %1141 = vmatpush1.msra.mxu0 0.0
    %1142 = vmatprep.subr.mxu0 0.0
    %1143 = vmatpush1.msra.mxu0 0.0
    %1144 = vmatprep.subr.mxu0 0.0
    %1145 = vmatpush1.msra.mxu0 0.0
    %1146 = vmatprep.subr.mxu0 0.0
    %1147 = vmatpush1.msra.mxu0 0.0
    %1148 = vmatprep.subr.mxu0 0.0
    %1149 = vmatpush1.msra.mxu0 0.0
    %1150 = vmatprep.subr.mxu0 0.0
    %1151 = vmatpush1.msra.mxu0 0.0
    %1152 = vmatprep.subr.mxu0 0.0
    %1153 = vmatpush1.msra.mxu0 0.0
    %1154 = vmatprep.subr.mxu0 0.0
    %1155 = vmatpush1.msra.mxu0 0.0
    %1156 = vmatprep.mubr.f32.mxu0 0.0
    %1157 = vmatmul.mubr.f32.gmra.mrb[0].mxu0 %v1087
    %v1158 = vpop.f32.mrb[0].mxu0
    %v1159 = vadd.f32 %v1083, %v1158
    %v1160 = vpop.f32.mrb[0].mxu0
    %1161 = vdwg.mxu0
    %vm1162 = vcmask 64512
    %v1163 = vsel %vm1162, %v1159, -inf
    %v1164 = vrot.slane %v1163, 4
    %v1165 = vmax.f32 %v1163, %v1164
    %v1166 = vrot.slane %v1165, 2
    %v1167 = vmax.f32 %v1165, %v1166
    %v1168 = vrot.slane %v1167, 1
    %v1169 = vmax.f32 %v1167, %v1168
    %v1170 = vsub.f32 %v1159, %v1169
    %v1171 = vmul.f32 %v1170, 1.442695
    %v1172 = vpow.pop %v1171
    %v1173 = vsel %vm1162, %v1172, 0.0
    %v1174 = vrot.slane %v1173, 4
    %v1175 = vadd.f32 %v1173, %v1174
    %v1176 = vrot.slane %v1175, 2
    %v1177 = vadd.f32 %v1175, %v1176
    %v1178 = vrot.slane %v1177, 1
    %v1179 = vadd.f32 %v1177, %v1178
    %v1180 = vlog2.pop %v1179
    %v1181 = vmul.f32 %v1180, 0.6931472
    %v1182 = vsub.f32 %v1170, %v1181
    %1183 = vst.msk [vmem:[#allocation5] sm:$0xff] %vm1162, %v1182
    // Predicated region
    $region38: #{tpu_custom_call.1} parent=1 // pred_check
      _
    $region39: #{tpu_custom_call.1} parent=1 // pred_check_branch
      %1185 = sbr.rel (0) target = $region41
    $region40: #{tpu_custom_call.1} parent=1 // pred_region
      %s1187 = ssub.s32 128, 128
      %1188 = vsyncadd [#allocation4], %s1187
      %s1190 = sshll.u32 [#allocation5], 4
      %s1191 = int_to_ptr.vmem [resolvable:$true] %s1190
      %1193 = dma.vmem_to_hbm [thread:$0]  %s1191, 128, %s8, [#allocation4]
    $region41: #{tpu_custom_call.1} parent=1 // pred_fallthru
      _
    // Predicated region
    $region42: #{tpu_custom_call.1} parent=1 // pred_check
      _
    $region43: #{tpu_custom_call.1} parent=1 // pred_check_branch
      %1195 = sbr.rel (0) target = $region45
    $region44: #{tpu_custom_call.1} parent=1 // pred_region
      %1196 = dma.done [#allocation4], 128
    $region45: #{tpu_custom_call.1} parent=1 // pred_fallthru
      _
    %1197 = vsyncpa [#allocation3], 1
    %1198 = vsyncpa [#allocation4], 1

</llo_original>
